<compile_context>
chip_gen: v7x
topology: tpu7x:2x2x1
jax: 0.10.0
libtpu: 0.0.40
codegen_flags: <defaults>
</compile_context>

<pallas_src>
import jax
import jax.numpy as jnp
import numpy as np
from jax.experimental import pallas as pl
from jax.experimental.pallas import tpu as pltpu


def _round_up(x, m):
    return (x + m - 1) // m * m


def _triple_attention_kernel(q_ref, k_ref, v_ref,
                             wq_tiled_ref, wk_bd_ref, wv_bd_ref,
                             g_ref, seg_ref, gt_ref, wo_tiled_ref, bo_ref,
                             o_ref):
    # "packed" lane index  i = m*HA + h*A + a   (MAX*HA lanes, neighbor-major)
    # "narrow" lane index  n = h*MAX + m        (H*MAX lanes, one score each)
    q = q_ref[...]                       # (TB, D)        bf16
    k = k_ref[...]                       # (TB, MAX*D)    bf16
    v = v_ref[...]                       # (TB, MAX*D)    bf16

    # Projections: one lane-dense matmul each (block-diag / lane-tiled weights).
    qb = jnp.dot(q, wq_tiled_ref[...], preferred_element_type=jnp.float32)  # (TB, MAX*HA)
    kp = jnp.dot(k, wk_bd_ref[...], preferred_element_type=jnp.float32)     # (TB, MAX*HA)
    vp = jnp.dot(v, wv_bd_ref[...], preferred_element_type=jnp.float32)     # (TB, MAX*HA)

    # Bilinear scores: s[b, h*MAX+m] = sum_a qb[b, h*A+a] * kp[b, m, h*A+a]
    prod = (qb * kp).astype(jnp.bfloat16)                                    # 256-lane VPU
    s = jnp.dot(prod, g_ref[...], preferred_element_type=jnp.float32)        # (TB, H*MAX)

    # Softmax over the neighbor axis m.  Subtracting the per-row global max is
    # constant w.r.t. m for every head, so this is exactly the per-(b, h)
    # softmax of the reference (and numerically stable).
    s = s - jnp.max(s, axis=-1, keepdims=True)
    e = jnp.exp(s)
    denom = jnp.dot(e.astype(jnp.bfloat16), seg_ref[...],
                    preferred_element_type=jnp.float32)   # sum over m, bcast over m
    p = e * pl.reciprocal(denom, approx=True)
    # TODO(synk): att_dropout (p=0.2) is identity in eval mode; training-mode
    #             dropout is not implemented.

    # Expand p back to the packed lane layout, weight the values; the sum over
    # neighbors is folded into the MAX-tiled output projection.
    p_packed = jnp.dot(p.astype(jnp.bfloat16), gt_ref[...],
                       preferred_element_type=jnp.float32)                   # (TB, MAX*HA)
    w = (p_packed * vp).astype(jnp.bfloat16)
    out = jnp.dot(w, wo_tiled_ref[...], preferred_element_type=jnp.float32)  # (TB, hidden)
    o_ref[...] = (out + bo_ref[...]).astype(o_ref.dtype)


def triple_attention(q, k, v, params, *, num_heads, block_b=512):
    """q: (B, D), k/v: (B, MAX, D). Returns (B, hidden). Eval-mode forward."""
    wq, wk, wv, wb, wo, bo = params
    B, D = q.shape
    _, MAX, _ = k.shape
    hidden = wo.shape[0]
    A = wb.shape[0]
    H = num_heads
    HA = H * A
    P = MAX * HA          # packed lane width (neighbors folded into lanes)
    KD = MAX * D          # packed input lane width
    NH = H * MAX          # narrow (one score per (head, neighbor)) lane width
    f32, bf16 = jnp.float32, jnp.bfloat16

    # ---- host-side weight prep (one time per call) -------------------------
    # Fold the bilinear matrix into the q projection:  qb_h = q @ (Wb @ Wq_h).T
    wqb = jnp.einsum("xa,had->hxd", wb, wq.reshape(H, A, D),
                     precision=jax.lax.Precision.HIGHEST).reshape(HA, D)
    wq_tiled = jnp.tile(wqb.T, (1, MAX)).astype(bf16)                  # (D, P)
    # Block-diagonal projections so kp/vp are single lane-dense matmuls.
    # (On v5e a pack factor of 4 — lane width 128 — would fill one MXU weight
    #  tile exactly; the 256-wide version below targets v6e/v7x.)
    wk_bd = jnp.kron(jnp.eye(MAX, dtype=f32), wk.T).astype(bf16)       # (KD, P)
    wv_bd = jnp.kron(jnp.eye(MAX, dtype=f32), wv.T).astype(bf16)       # (KD, P)
    # Output projection tiled over m: folds the sum over neighbors into Wo.
    wo_tiled = jnp.tile(wo.T, (MAX, 1)).astype(bf16)                   # (P, hidden)
    bo2 = bo.reshape(1, hidden).astype(f32)

    # 0/1 grouping matrices (exact in bf16).
    pi = np.arange(P)
    pm, ph = pi // HA, (pi % HA) // A            # neighbor / head of packed lane
    ni = np.arange(NH)
    nh, nm = ni // MAX, ni % MAX                 # head / neighbor of narrow lane
    g_np = (ph[:, None] == nh[None, :]) & (pm[:, None] == nm[None, :])
    g = jnp.asarray(g_np, dtype=bf16)            # (P, NH)  per-head lane reduce
    gt = jnp.asarray(g_np.T, dtype=bf16)         # (NH, P)  expand p to packed lanes
    seg = jnp.asarray(np.kron(np.eye(H), np.ones((MAX, MAX))), dtype=bf16)  # (NH, NH)

    # ---- activations: pack neighbors into lanes, cast to bf16 --------------
    q_p = q.astype(bf16)
    k_p = k.reshape(B, KD).astype(bf16)
    v_p = v.reshape(B, KD).astype(bf16)

    # Batch tiling: sublane-aligned, capped so the grid has >= 2 steps
    # (both v7x TensorCores busy) and TB <= 2048 (v7x VMEM headroom).
    TB = max(8, _round_up(min(block_b, 2048, max(B // 2, 1)), 8))
    Bp = _round_up(B, TB)
    if Bp != B:
        q_p = jnp.pad(q_p, ((0, Bp - B), (0, 0)))
        k_p = jnp.pad(k_p, ((0, Bp - B), (0, 0)))
        v_p = jnp.pad(v_p, ((0, Bp - B), (0, 0)))

    out = pl.pallas_call(
        _triple_attention_kernel,
        out_shape=jax.ShapeDtypeStruct((Bp, hidden), jnp.float32),
        grid_spec=pltpu.PrefetchScalarGridSpec(
            num_scalar_prefetch=0,
            grid=(Bp // TB,),
            in_specs=[
                pl.BlockSpec((TB, D),     lambda b: (b, 0)),   # q
                pl.BlockSpec((TB, KD),    lambda b: (b, 0)),   # k (neighbor-packed)
                pl.BlockSpec((TB, KD),    lambda b: (b, 0)),   # v (neighbor-packed)
                pl.BlockSpec((D, P),      lambda b: (0, 0)),   # (Wb@Wq).T tiled over m
                pl.BlockSpec((KD, P),     lambda b: (0, 0)),   # blockdiag(Wk.T)
                pl.BlockSpec((KD, P),     lambda b: (0, 0)),   # blockdiag(Wv.T)
                pl.BlockSpec((P, NH),     lambda b: (0, 0)),   # G: per-head lane reduce
                pl.BlockSpec((NH, NH),    lambda b: (0, 0)),   # seg-sum over neighbors
                pl.BlockSpec((NH, P),     lambda b: (0, 0)),   # G.T: expand p
                pl.BlockSpec((P, hidden), lambda b: (0, 0)),   # Wo.T tiled over m
                pl.BlockSpec((1, hidden), lambda b: (0, 0)),   # bo
            ],
            out_specs=pl.BlockSpec((TB, hidden), lambda b: (b, 0)),
        ),
        compiler_params=pltpu.CompilerParams(
            dimension_semantics=("parallel",)),
    )(q_p, k_p, v_p, wq_tiled, wk_bd, wv_bd, g, seg, gt, wo_tiled, bo2)
    return out[:B]


def reference_forward(q, k, v, params, *, num_heads):
    """Pure-JAX f32 transcription of the PyTorch forward (eval mode)."""
    wq, wk, wv, wb, wo, bo = params
    B, D = q.shape
    A = wb.shape[0]
    H = num_heads
    qe = q[:, None, :]                                              # (B,1,D)
    qp = (qe @ wq.T).reshape(B, -1, H, A).transpose(0, 2, 1, 3)     # (B,H,1,A)
    kp = (k @ wk.T).reshape(B, -1, H, A).transpose(0, 2, 3, 1)      # (B,H,A,MAX)
    vp = (v @ wv.T).reshape(B, -1, H, A).transpose(0, 2, 1, 3)      # (B,H,MAX,A)
    x = jnp.matmul(qp @ wb.T, kp)                                   # (B,H,1,MAX)
    x = jax.nn.softmax(x, axis=3)
    x = jnp.matmul(x, vp)                                           # (B,H,1,A)
    x = x.transpose(0, 2, 1, 3).reshape(B, -1, H * A)[:, 0, :]      # (B,H*A)
    return x @ wo.T + bo


if __name__ == "__main__":
    # Small, module-consistent shapes: (few/b) batch, max neighbors, hidden.
    B = 64
    MAX = 8
    hidden = 32
    num_heads = 4
    att_size = hidden // num_heads   # 8

    key = jax.random.PRNGKey(0)
    k_q, k_k, k_v, k_wq, k_wk, k_wv, k_wb, k_wo, k_bo = jax.random.split(key, 9)

    # Inputs: q is the pre-unsqueeze (B, D) tensor, k/v are (B, MAX, D).
    q = jax.random.normal(k_q, (B, hidden), dtype=jnp.float32)
    k = jax.random.normal(k_k, (B, MAX, hidden), dtype=jnp.float32)
    v = jax.random.normal(k_v, (B, MAX, hidden), dtype=jnp.float32)

    # Deterministic parameter init (PyTorch (out, in) convention).
    scale = 0.1
    wq = scale * jax.random.normal(k_wq, (num_heads * att_size, hidden), jnp.float32)
    wk = scale * jax.random.normal(k_wk, (num_heads * att_size, hidden), jnp.float32)
    wv = scale * jax.random.normal(k_wv, (num_heads * att_size, hidden), jnp.float32)
    wb = scale * jax.random.normal(k_wb, (att_size, att_size), jnp.float32)
    wo = scale * jax.random.normal(k_wo, (hidden, num_heads * att_size), jnp.float32)
    bo = scale * jax.random.normal(k_bo, (hidden,), jnp.float32)
    params = (wq, wk, wv, wb, wo, bo)

    # Default block_b with B=64 gives TB=32 -> a 2-step grid (exercises the
    # pipeline and keeps both v7x TensorCores busy on the "parallel" axis).
    out = triple_attention(q, k, v, params, num_heads=num_heads)
    out = jax.block_until_ready(out)

    ref = reference_forward(q, k, v, params, num_heads=num_heads)
    # Tolerance loosened for bf16 activations/weights + approx reciprocal.
    np.testing.assert_allclose(np.asarray(out), np.asarray(ref),
                               rtol=2e-2, atol=2e-2)
    print("KERNEL_OK")
</pallas_src>

<mosaic_0001>
module attributes {stable_mosaic.version = 11 : i64} {
  func.func @_triple_attention_kernel(%arg0: i32, %arg1: memref<32x32xbf16, #tpu.memory_space<vmem>>, %arg2: memref<32x256xbf16, #tpu.memory_space<vmem>>, %arg3: memref<32x256xbf16, #tpu.memory_space<vmem>>, %arg4: memref<32x256xbf16, #tpu.memory_space<vmem>>, %arg5: memref<256x256xbf16, #tpu.memory_space<vmem>>, %arg6: memref<256x256xbf16, #tpu.memory_space<vmem>>, %arg7: memref<256x32xbf16, #tpu.memory_space<vmem>>, %arg8: memref<32x32xbf16, #tpu.memory_space<vmem>>, %arg9: memref<32x256xbf16, #tpu.memory_space<vmem>>, %arg10: memref<256x32xbf16, #tpu.memory_space<vmem>>, %arg11: memref<1x32xf32, #tpu.memory_space<vmem>>, %arg12: memref<32x32xf32, #tpu.memory_space<vmem>>) attributes {dimension_semantics = [#tpu.dimension_semantics<parallel>], iteration_bounds = array<i64: 2>, scalar_prefetch = 0 : i64, scratch_operands = 0 : i64, tpu.core_type = #tpu.core_type<tc>, window_params = [{transform_indices = @transform_0, window_bounds = array<i64: 32, 32>}, {transform_indices = @transform_1, window_bounds = array<i64: 32, 256>}, {transform_indices = @transform_2, window_bounds = array<i64: 32, 256>}, {pipeline_mode = #tpu.pipeline_mode<synchronous>, transform_indices = @transform_3, window_bounds = array<i64: 32, 256>}, {pipeline_mode = #tpu.pipeline_mode<synchronous>, transform_indices = @transform_4, window_bounds = array<i64: 256, 256>}, {pipeline_mode = #tpu.pipeline_mode<synchronous>, transform_indices = @transform_5, window_bounds = array<i64: 256, 256>}, {pipeline_mode = #tpu.pipeline_mode<synchronous>, transform_indices = @transform_6, window_bounds = array<i64: 256, 32>}, {pipeline_mode = #tpu.pipeline_mode<synchronous>, transform_indices = @transform_7, window_bounds = array<i64: 32, 32>}, {pipeline_mode = #tpu.pipeline_mode<synchronous>, transform_indices = @transform_8, window_bounds = array<i64: 32, 256>}, {pipeline_mode = #tpu.pipeline_mode<synchronous>, transform_indices = @transform_9, window_bounds = array<i64: 256, 32>}, {pipeline_mode = #tpu.pipeline_mode<synchronous>, transform_indices = @transform_10, window_bounds = array<i64: 1, 32>}, {transform_indices = @transform_11, window_bounds = array<i64: 32, 32>}]} {
    %c0 = arith.constant 0 : index
    %c0_0 = arith.constant 0 : index
    %0 = vector.load %arg1[%c0, %c0_0] : memref<32x32xbf16, #tpu.memory_space<vmem>>, vector<32x32xbf16>
    %c0_1 = arith.constant 0 : index
    %c0_2 = arith.constant 0 : index
    %1 = vector.load %arg2[%c0_1, %c0_2] : memref<32x256xbf16, #tpu.memory_space<vmem>>, vector<32x256xbf16>
    %c0_3 = arith.constant 0 : index
    %c0_4 = arith.constant 0 : index
    %2 = vector.load %arg3[%c0_3, %c0_4] : memref<32x256xbf16, #tpu.memory_space<vmem>>, vector<32x256xbf16>
    %c0_5 = arith.constant 0 : index
    %c0_6 = arith.constant 0 : index
    %3 = vector.load %arg4[%c0_5, %c0_6] : memref<32x256xbf16, #tpu.memory_space<vmem>>, vector<32x256xbf16>
    %cst = arith.constant dense<0.000000e+00> : vector<32x256xf32>
    %4 = tpu.matmul %0, %3, %cst {dimension_numbers = #tpu.dot_dimension_numbers<[1], [0], [0], [1], [0, 0, 1, 1], [], []>} : vector<32x32xbf16>, vector<32x256xbf16>, vector<32x256xf32> -> vector<32x256xf32>
    %c0_7 = arith.constant 0 : index
    %c0_8 = arith.constant 0 : index
    %5 = vector.load %arg5[%c0_7, %c0_8] : memref<256x256xbf16, #tpu.memory_space<vmem>>, vector<256x256xbf16>
    %cst_9 = arith.constant dense<0.000000e+00> : vector<32x256xf32>
    %6 = tpu.matmul %1, %5, %cst_9 {dimension_numbers = #tpu.dot_dimension_numbers<[1], [0], [0], [1], [0, 0, 1, 1], [], []>} : vector<32x256xbf16>, vector<256x256xbf16>, vector<32x256xf32> -> vector<32x256xf32>
    %c0_10 = arith.constant 0 : index
    %c0_11 = arith.constant 0 : index
    %7 = vector.load %arg6[%c0_10, %c0_11] : memref<256x256xbf16, #tpu.memory_space<vmem>>, vector<256x256xbf16>
    %cst_12 = arith.constant dense<0.000000e+00> : vector<32x256xf32>
    %8 = tpu.matmul %2, %7, %cst_12 {dimension_numbers = #tpu.dot_dimension_numbers<[1], [0], [0], [1], [0, 0, 1, 1], [], []>} : vector<32x256xbf16>, vector<256x256xbf16>, vector<32x256xf32> -> vector<32x256xf32>
    %9 = arith.mulf %4, %6 : vector<32x256xf32>
    %10 = arith.truncf %9 : vector<32x256xf32> to vector<32x256xbf16>
    %c0_13 = arith.constant 0 : index
    %c0_14 = arith.constant 0 : index
    %11 = vector.load %arg7[%c0_13, %c0_14] : memref<256x32xbf16, #tpu.memory_space<vmem>>, vector<256x32xbf16>
    %cst_15 = arith.constant dense<0.000000e+00> : vector<32x32xf32>
    %12 = tpu.matmul %10, %11, %cst_15 {dimension_numbers = #tpu.dot_dimension_numbers<[1], [0], [0], [1], [0, 0, 1, 1], [], []>} : vector<32x256xbf16>, vector<256x32xbf16>, vector<32x32xf32> -> vector<32x32xf32>
    %cst_16 = arith.constant dense<0xFF800000> : vector<32xf32>
    %13 = vector.multi_reduction <maximumf>, %12, %cst_16 [1] : vector<32x32xf32> to vector<32xf32>
    %14 = vector.shape_cast %13 : vector<32xf32> to vector<32x1xf32>
    %15 = vector.broadcast %14 : vector<32x1xf32> to vector<32x32xf32>
    %16 = arith.subf %12, %15 : vector<32x32xf32>
    %17 = math.exp %16 : vector<32x32xf32>
    %18 = arith.truncf %17 : vector<32x32xf32> to vector<32x32xbf16>
    %c0_17 = arith.constant 0 : index
    %c0_18 = arith.constant 0 : index
    %19 = vector.load %arg8[%c0_17, %c0_18] : memref<32x32xbf16, #tpu.memory_space<vmem>>, vector<32x32xbf16>
    %cst_19 = arith.constant dense<0.000000e+00> : vector<32x32xf32>
    %20 = tpu.matmul %18, %19, %cst_19 {dimension_numbers = #tpu.dot_dimension_numbers<[1], [0], [0], [1], [0, 0, 1, 1], [], []>} : vector<32x32xbf16>, vector<32x32xbf16>, vector<32x32xf32> -> vector<32x32xf32>
    %21 = tpu.reciprocal %20 {approx = true} : vector<32x32xf32> -> vector<32x32xf32>
    %22 = arith.mulf %17, %21 : vector<32x32xf32>
    %23 = arith.truncf %22 : vector<32x32xf32> to vector<32x32xbf16>
    %c0_20 = arith.constant 0 : index
    %c0_21 = arith.constant 0 : index
    %24 = vector.load %arg9[%c0_20, %c0_21] : memref<32x256xbf16, #tpu.memory_space<vmem>>, vector<32x256xbf16>
    %cst_22 = arith.constant dense<0.000000e+00> : vector<32x256xf32>
    %25 = tpu.matmul %23, %24, %cst_22 {dimension_numbers = #tpu.dot_dimension_numbers<[1], [0], [0], [1], [0, 0, 1, 1], [], []>} : vector<32x32xbf16>, vector<32x256xbf16>, vector<32x256xf32> -> vector<32x256xf32>
    %26 = arith.mulf %25, %8 : vector<32x256xf32>
    %27 = arith.truncf %26 : vector<32x256xf32> to vector<32x256xbf16>
    %c0_23 = arith.constant 0 : index
    %c0_24 = arith.constant 0 : index
    %28 = vector.load %arg10[%c0_23, %c0_24] : memref<256x32xbf16, #tpu.memory_space<vmem>>, vector<256x32xbf16>
    %cst_25 = arith.constant dense<0.000000e+00> : vector<32x32xf32>
    %29 = tpu.matmul %27, %28, %cst_25 {dimension_numbers = #tpu.dot_dimension_numbers<[1], [0], [0], [1], [0, 0, 1, 1], [], []>} : vector<32x256xbf16>, vector<256x32xbf16>, vector<32x32xf32> -> vector<32x32xf32>
    %c0_26 = arith.constant 0 : index
    %c0_27 = arith.constant 0 : index
    %30 = vector.load %arg11[%c0_26, %c0_27] : memref<1x32xf32, #tpu.memory_space<vmem>>, vector<1x32xf32>
    %31 = vector.broadcast %30 : vector<1x32xf32> to vector<32x32xf32>
    %32 = arith.addf %29, %31 : vector<32x32xf32>
    %c0_28 = arith.constant 0 : index
    %c0_29 = arith.constant 0 : index
    %33 = vector.load %arg12[%c0_28, %c0_29] : memref<32x32xf32, #tpu.memory_space<vmem>>, vector<32x32xf32>
    tpu.vector_store %arg12[%c0_28, %c0_29], %32 {strides = array<i32>} : memref<32x32xf32, #tpu.memory_space<vmem>>, vector<32x32xf32>,
    return
  }
  func.func @transform_0(%arg0: i32) -> (i32, i32) {
    %c0_i32 = arith.constant 0 : i32
    %c0_i32_0 = arith.constant 0 : i32
    return %arg0, %c0_i32 : i32, i32
  }
  func.func @transform_1(%arg0: i32) -> (i32, i32) {
    %c0_i32 = arith.constant 0 : i32
    %c0_i32_0 = arith.constant 0 : i32
    return %arg0, %c0_i32 : i32, i32
  }
  func.func @transform_2(%arg0: i32) -> (i32, i32) {
    %c0_i32 = arith.constant 0 : i32
    %c0_i32_0 = arith.constant 0 : i32
    return %arg0, %c0_i32 : i32, i32
  }
  func.func @transform_3(%arg0: i32) -> (i32, i32) {
    %c0_i32 = arith.constant 0 : i32
    %c0_i32_0 = arith.constant 0 : i32
    %c0_i32_1 = arith.constant 0 : i32
    return %c0_i32, %c0_i32_0 : i32, i32
  }
  func.func @transform_4(%arg0: i32) -> (i32, i32) {
    %c0_i32 = arith.constant 0 : i32
    %c0_i32_0 = arith.constant 0 : i32
    %c0_i32_1 = arith.constant 0 : i32
    return %c0_i32, %c0_i32_0 : i32, i32
  }
  func.func @transform_5(%arg0: i32) -> (i32, i32) {
    %c0_i32 = arith.constant 0 : i32
    %c0_i32_0 = arith.constant 0 : i32
    %c0_i32_1 = arith.constant 0 : i32
    return %c0_i32, %c0_i32_0 : i32, i32
  }
  func.func @transform_6(%arg0: i32) -> (i32, i32) {
    %c0_i32 = arith.constant 0 : i32
    %c0_i32_0 = arith.constant 0 : i32
    %c0_i32_1 = arith.constant 0 : i32
    return %c0_i32, %c0_i32_0 : i32, i32
  }
  func.func @transform_7(%arg0: i32) -> (i32, i32) {
    %c0_i32 = arith.constant 0 : i32
    %c0_i32_0 = arith.constant 0 : i32
    %c0_i32_1 = arith.constant 0 : i32
    return %c0_i32, %c0_i32_0 : i32, i32
  }
  func.func @transform_8(%arg0: i32) -> (i32, i32) {
    %c0_i32 = arith.constant 0 : i32
    %c0_i32_0 = arith.constant 0 : i32
    %c0_i32_1 = arith.constant 0 : i32
    return %c0_i32, %c0_i32_0 : i32, i32
  }
  func.func @transform_9(%arg0: i32) -> (i32, i32) {
    %c0_i32 = arith.constant 0 : i32
    %c0_i32_0 = arith.constant 0 : i32
    %c0_i32_1 = arith.constant 0 : i32
    return %c0_i32, %c0_i32_0 : i32, i32
  }
  func.func @transform_10(%arg0: i32) -> (i32, i32) {
    %c0_i32 = arith.constant 0 : i32
    %c0_i32_0 = arith.constant 0 : i32
    %c0_i32_1 = arith.constant 0 : i32
    return %c0_i32, %c0_i32_0 : i32, i32
  }
  func.func @transform_11(%arg0: i32) -> (i32, i32) {
    %c0_i32 = arith.constant 0 : i32
    %c0_i32_0 = arith.constant 0 : i32
    return %arg0, %c0_i32 : i32, i32
  }
}

</mosaic_0001>

<llo_original>
// kernel: tpu_custom_call.1
$region0: #{tpu_custom_call.1}
  #allocation0 [shape = 'u32[]', space=smem, size = 0x4, offset = 0x4, fixed_abs, tag = 'smem constant byte address 0x4 - core index']
  #allocation1 [shape = 'u32[144,128]{1,0:T(1,128)}', space=vmem, size = 0x12000, scoped, tag = 'internal scratch']
  %s0 = inlined_call_operand.vmem [shape: bf16[64,32], index: 0, kind: input, shape index: {}]
  %s1 = inlined_call_operand.vmem [shape: bf16[64,256], index: 1, kind: input, shape index: {}]
  %s2 = inlined_call_operand.hbm [shape: bf16[64,256], index: 2, kind: input, shape index: {}]
  %s3 = inlined_call_operand.hbm [shape: bf16[32,256], index: 3, kind: input, shape index: {}]
  %s4 = inlined_call_operand.vmem [shape: bf16[256,256], index: 4, kind: input, shape index: {}]
  %s5 = inlined_call_operand.hbm [shape: bf16[256,256], index: 5, kind: input, shape index: {}]
  %s6 = inlined_call_operand.vmem [shape: bf16[256,32], index: 6, kind: input, shape index: {}]
  %s7 = inlined_call_operand.hbm [shape: bf16[32,32], index: 7, kind: input, shape index: {}]
  %s8 = inlined_call_operand.hbm [shape: bf16[32,256], index: 8, kind: input, shape index: {}]
  %s9 = inlined_call_operand.vmem [shape: bf16[256,32], index: 9, kind: input, shape index: {}]
  %s10 = inlined_call_operand.vmem [shape: f32[1,32], index: 10, kind: input, shape index: {}]
  %s11 = inlined_call_operand.vmem [shape: f32[64,32], index: 11, kind: output, shape index: {}]
  %s12 = sld [smem:[#allocation0]]
  $region97: #{tpu_custom_call.1} parent=0
    _
  %s14 = ssub.s32 1, %s12
  %s15 = scalar_select 0, %s14, %s12
  $region1: #{tpu_custom_call.1} parent=0
    #allocation2 [shape = 'u8[32768]{0}', space=vmem, size = 0x8000, scoped, tag = 'input window, operand 2']
    #allocation3 [shape = 's32[2]{0}', space=sflag, size = 0x8, scoped, tag = 'scoped memory for tpu_custom_call.1']
    #allocation4 [shape = 'u8[16384]{0}', space=vmem, size = 0x4000, scoped, tag = 'input window, operand 3, single buffered']
    #allocation5 [shape = 's32[1]{0}', space=sflag, size = 0x4, scoped, tag = 'scoped memory for tpu_custom_call.1']
    #allocation6 [shape = 'u8[131072]{0}', space=vmem, size = 0x20000, scoped, tag = 'input window, operand 5, single buffered']
    #allocation7 [shape = 'u8[8192]{0}', space=vmem, size = 0x2000, scoped, tag = 'input window, operand 7, single buffered']
    #allocation8 [shape = 's32[1]{0}', space=sflag, size = 0x4, scoped, tag = 'scoped memory for tpu_custom_call.1']
    #allocation9 [shape = 'u8[16384]{0}', space=vmem, size = 0x4000, scoped, tag = 'input window, operand 8, single buffered']
    %16 = vsyncpa [#allocation3], 0
    %s17 = scalar_lea.sflag [#allocation3], 1
    %18 = vsyncpa %s17, 0
    %19 = vsyncpa [#allocation5], 0
    %20 = vsyncpa [#allocation8], 0
    loop: start=0, step=1, limit=4
    $region2: #{tpu_custom_call.1} parent=1 // loop_pre_header
      _
    $region3: #{tpu_custom_call.1} parent=1 // loop_header
      %s22 = sphi 0, %s26
      %p23 = scmp.ge.s32.totalorder %s22, 4
      %s32 = sphi 0, %s34
      %s35 = sphi 0, %s32
      %s36 = sphi 0, %s35
      %s52 = sphi 0, %s36
      %s58 = sphi 0, %s60
      %s61 = sphi 0, %s58
      %s62 = sphi 0, %s61
      %s78 = sphi 0, %s62
      %s84 = sphi 0, %s86
      %s87 = sphi 0, %s84
      %s88 = sphi 0, %s87
      %s104 = sphi 0, %s88
      %s108 = sphi 0, %s108
      %s110 = sphi 0, %s108
      %s111 = sphi 0, %s110
      %s125 = sphi 0, %s111
      %s129 = sphi 0, %s129
      %s131 = sphi 0, %s129
      %s132 = sphi 0, %s131
      %s146 = sphi 0, %s132
      %s150 = sphi 0, %s150
      %s152 = sphi 0, %s150
      %s153 = sphi 0, %s152
      %s167 = sphi 0, %s153
      %s171 = sphi 0, %s171
      %s173 = sphi 0, %s171
      %s174 = sphi 0, %s173
      %s188 = sphi 0, %s174
      %s192 = sphi 0, %s192
      %s194 = sphi 0, %s192
      %s195 = sphi 0, %s194
      %s209 = sphi 0, %s195
      %s213 = sphi 0, %s213
      %s215 = sphi 0, %s213
      %s216 = sphi 0, %s215
      %s230 = sphi 0, %s216
      %s234 = sphi 0, %s234
      %s236 = sphi 0, %s234
      %s237 = sphi 0, %s236
      %s251 = sphi 0, %s237
      %s255 = sphi 0, %s255
      %s257 = sphi 0, %s255
      %s258 = sphi 0, %s257
      %s272 = sphi 0, %s258
      %s278 = sphi 0, %s280
      %s281 = sphi 0, %s278
      %s282 = sphi 0, %s281
      %s298 = sphi 0, %s282
    $region4: #{tpu_custom_call.1} parent=1 // loop_header_branch
      %25 = sbr.rel (%p23) target = $region8
    $region5: #{tpu_custom_call.1} parent=1 // loop_body
      %s27 = ssub.s32 %s22, 1
      %s28 = ssub.s32 %s22, 2
      %s29 = sadd.s32 %s22, 1
      %s30 = ssub.s32 %s22, %s29
      %p31 = scmp.eq.s32.totalorder %s30, 0
      %s33 = sadd.s32 %s32, 1
      %s34 = scalar_select %p31, %s32, %s33
      %p37 = pneg %p31
      %p38 = scmp.eq.s32.totalorder %s22, 1
      %p39 = por %p37, %p38
      %p40 = scmp.ne.s32.totalorder %s32, %s35
      %p41 = scmp.eq.s32.totalorder %s22, 0
      %p42 = por %p40, %p41
      %p43 = scmp.ne.s32.totalorder %s32, %s35
      %p44 = scmp.eq.s32.totalorder %s27, 1
      %p45 = por %p43, %p44
      %p46 = scmp.ne.s32.totalorder %s35, %s36
      %p47 = scmp.eq.s32.totalorder %s27, 0
      %p48 = por %p46, %p47
      %p49 = scmp.ne.s32.totalorder %s35, %s36
      %p50 = scmp.eq.s32.totalorder %s28, 1
      %p51 = por %p49, %p50
      %p53 = scmp.ne.s32.totalorder %s36, %s52
      %p54 = scmp.eq.s32.totalorder %s28, 0
      %p55 = por %p53, %p54
      %s56 = ssub.s32 %s22, %s29
      %p57 = scmp.eq.s32.totalorder %s56, 0
      %s59 = sadd.s32 %s58, 1
      %s60 = scalar_select %p57, %s58, %s59
      %p63 = pneg %p57
      %p64 = scmp.eq.s32.totalorder %s22, 1
      %p65 = por %p63, %p64
      %p66 = scmp.ne.s32.totalorder %s58, %s61
      %p67 = scmp.eq.s32.totalorder %s22, 0
      %p68 = por %p66, %p67
      %p69 = scmp.ne.s32.totalorder %s58, %s61
      %p70 = scmp.eq.s32.totalorder %s27, 1
      %p71 = por %p69, %p70
      %p72 = scmp.ne.s32.totalorder %s61, %s62
      %p73 = scmp.eq.s32.totalorder %s27, 0
      %p74 = por %p72, %p73
      %p75 = scmp.ne.s32.totalorder %s61, %s62
      %p76 = scmp.eq.s32.totalorder %s28, 1
      %p77 = por %p75, %p76
      %p79 = scmp.ne.s32.totalorder %s62, %s78
      %p80 = scmp.eq.s32.totalorder %s28, 0
      %p81 = por %p79, %p80
      %s82 = ssub.s32 %s22, %s29
      %p83 = scmp.eq.s32.totalorder %s82, 0
      %s85 = sadd.s32 %s84, 1
      %s86 = scalar_select %p83, %s84, %s85
      %p89 = pneg %p83
      %p90 = scmp.eq.s32.totalorder %s22, 1
      %p91 = por %p89, %p90
      %p92 = scmp.ne.s32.totalorder %s84, %s87
      %p93 = scmp.eq.s32.totalorder %s22, 0
      %p94 = por %p92, %p93
      %p95 = scmp.ne.s32.totalorder %s84, %s87
      %p96 = scmp.eq.s32.totalorder %s27, 1
      %p97 = por %p95, %p96
      %p98 = scmp.ne.s32.totalorder %s87, %s88
      %p99 = scmp.eq.s32.totalorder %s27, 0
      %p100 = por %p98, %p99
      %p101 = scmp.ne.s32.totalorder %s87, %s88
      %p102 = scmp.eq.s32.totalorder %s28, 1
      %p103 = por %p101, %p102
      %p105 = scmp.ne.s32.totalorder %s88, %s104
      %p106 = scmp.eq.s32.totalorder %s28, 0
      %p107 = por %p105, %p106
      %s109 = sadd.s32 %s108, 1
      %p112 = scmp.eq.s32.totalorder %s22, 1
      %p113 = scmp.ne.s32.totalorder %s108, %s110
      %p114 = scmp.eq.s32.totalorder %s22, 0
      %p115 = por %p113, %p114
      %p116 = scmp.ne.s32.totalorder %s108, %s110
      %p117 = scmp.eq.s32.totalorder %s27, 1
      %p118 = por %p116, %p117
      %p119 = scmp.ne.s32.totalorder %s110, %s111
      %p120 = scmp.eq.s32.totalorder %s27, 0
      %p121 = por %p119, %p120
      %p122 = scmp.ne.s32.totalorder %s110, %s111
      %p123 = scmp.eq.s32.totalorder %s28, 1
      %p124 = por %p122, %p123
      %p126 = scmp.ne.s32.totalorder %s111, %s125
      %p127 = scmp.eq.s32.totalorder %s28, 0
      %p128 = por %p126, %p127
      %s130 = sadd.s32 %s129, 1
      %p133 = scmp.eq.s32.totalorder %s22, 1
      %p134 = scmp.ne.s32.totalorder %s129, %s131
      %p135 = scmp.eq.s32.totalorder %s22, 0
      %p136 = por %p134, %p135
      %p137 = scmp.ne.s32.totalorder %s129, %s131
      %p138 = scmp.eq.s32.totalorder %s27, 1
      %p139 = por %p137, %p138
      %p140 = scmp.ne.s32.totalorder %s131, %s132
      %p141 = scmp.eq.s32.totalorder %s27, 0
      %p142 = por %p140, %p141
      %p143 = scmp.ne.s32.totalorder %s131, %s132
      %p144 = scmp.eq.s32.totalorder %s28, 1
      %p145 = por %p143, %p144
      %p147 = scmp.ne.s32.totalorder %s132, %s146
      %p148 = scmp.eq.s32.totalorder %s28, 0
      %p149 = por %p147, %p148
      %s151 = sadd.s32 %s150, 1
      %p154 = scmp.eq.s32.totalorder %s22, 1
      %p155 = scmp.ne.s32.totalorder %s150, %s152
      %p156 = scmp.eq.s32.totalorder %s22, 0
      %p157 = por %p155, %p156
      %p158 = scmp.ne.s32.totalorder %s150, %s152
      %p159 = scmp.eq.s32.totalorder %s27, 1
      %p160 = por %p158, %p159
      %p161 = scmp.ne.s32.totalorder %s152, %s153
      %p162 = scmp.eq.s32.totalorder %s27, 0
      %p163 = por %p161, %p162
      %p164 = scmp.ne.s32.totalorder %s152, %s153
      %p165 = scmp.eq.s32.totalorder %s28, 1
      %p166 = por %p164, %p165
      %p168 = scmp.ne.s32.totalorder %s153, %s167
      %p169 = scmp.eq.s32.totalorder %s28, 0
      %p170 = por %p168, %p169
      %s172 = sadd.s32 %s171, 1
      %p175 = scmp.eq.s32.totalorder %s22, 1
      %p176 = scmp.ne.s32.totalorder %s171, %s173
      %p177 = scmp.eq.s32.totalorder %s22, 0
      %p178 = por %p176, %p177
      %p179 = scmp.ne.s32.totalorder %s171, %s173
      %p180 = scmp.eq.s32.totalorder %s27, 1
      %p181 = por %p179, %p180
      %p182 = scmp.ne.s32.totalorder %s173, %s174
      %p183 = scmp.eq.s32.totalorder %s27, 0
      %p184 = por %p182, %p183
      %p185 = scmp.ne.s32.totalorder %s173, %s174
      %p186 = scmp.eq.s32.totalorder %s28, 1
      %p187 = por %p185, %p186
      %p189 = scmp.ne.s32.totalorder %s174, %s188
      %p190 = scmp.eq.s32.totalorder %s28, 0
      %p191 = por %p189, %p190
      %s193 = sadd.s32 %s192, 1
      %p196 = scmp.eq.s32.totalorder %s22, 1
      %p197 = scmp.ne.s32.totalorder %s192, %s194
      %p198 = scmp.eq.s32.totalorder %s22, 0
      %p199 = por %p197, %p198
      %p200 = scmp.ne.s32.totalorder %s192, %s194
      %p201 = scmp.eq.s32.totalorder %s27, 1
      %p202 = por %p200, %p201
      %p203 = scmp.ne.s32.totalorder %s194, %s195
      %p204 = scmp.eq.s32.totalorder %s27, 0
      %p205 = por %p203, %p204
      %p206 = scmp.ne.s32.totalorder %s194, %s195
      %p207 = scmp.eq.s32.totalorder %s28, 1
      %p208 = por %p206, %p207
      %p210 = scmp.ne.s32.totalorder %s195, %s209
      %p211 = scmp.eq.s32.totalorder %s28, 0
      %p212 = por %p210, %p211
      %s214 = sadd.s32 %s213, 1
      %p217 = scmp.eq.s32.totalorder %s22, 1
      %p218 = scmp.ne.s32.totalorder %s213, %s215
      %p219 = scmp.eq.s32.totalorder %s22, 0
      %p220 = por %p218, %p219
      %p221 = scmp.ne.s32.totalorder %s213, %s215
      %p222 = scmp.eq.s32.totalorder %s27, 1
      %p223 = por %p221, %p222
      %p224 = scmp.ne.s32.totalorder %s215, %s216
      %p225 = scmp.eq.s32.totalorder %s27, 0
      %p226 = por %p224, %p225
      %p227 = scmp.ne.s32.totalorder %s215, %s216
      %p228 = scmp.eq.s32.totalorder %s28, 1
      %p229 = por %p227, %p228
      %p231 = scmp.ne.s32.totalorder %s216, %s230
      %p232 = scmp.eq.s32.totalorder %s28, 0
      %p233 = por %p231, %p232
      %s235 = sadd.s32 %s234, 1
      %p238 = scmp.eq.s32.totalorder %s22, 1
      %p239 = scmp.ne.s32.totalorder %s234, %s236
      %p240 = scmp.eq.s32.totalorder %s22, 0
      %p241 = por %p239, %p240
      %p242 = scmp.ne.s32.totalorder %s234, %s236
      %p243 = scmp.eq.s32.totalorder %s27, 1
      %p244 = por %p242, %p243
      %p245 = scmp.ne.s32.totalorder %s236, %s237
      %p246 = scmp.eq.s32.totalorder %s27, 0
      %p247 = por %p245, %p246
      %p248 = scmp.ne.s32.totalorder %s236, %s237
      %p249 = scmp.eq.s32.totalorder %s28, 1
      %p250 = por %p248, %p249
      %p252 = scmp.ne.s32.totalorder %s237, %s251
      %p253 = scmp.eq.s32.totalorder %s28, 0
      %p254 = por %p252, %p253
      %s256 = sadd.s32 %s255, 1
      %p259 = scmp.eq.s32.totalorder %s22, 1
      %p260 = scmp.ne.s32.totalorder %s255, %s257
      %p261 = scmp.eq.s32.totalorder %s22, 0
      %p262 = por %p260, %p261
      %p263 = scmp.ne.s32.totalorder %s255, %s257
      %p264 = scmp.eq.s32.totalorder %s27, 1
      %p265 = por %p263, %p264
      %p266 = scmp.ne.s32.totalorder %s257, %s258
      %p267 = scmp.eq.s32.totalorder %s27, 0
      %p268 = por %p266, %p267
      %p269 = scmp.ne.s32.totalorder %s257, %s258
      %p270 = scmp.eq.s32.totalorder %s28, 1
      %p271 = por %p269, %p270
      %p273 = scmp.ne.s32.totalorder %s258, %s272
      %p274 = scmp.eq.s32.totalorder %s28, 0
      %p275 = por %p273, %p274
      %s276 = ssub.s32 %s22, %s29
      %p277 = scmp.eq.s32.totalorder %s276, 0
      %s279 = sadd.s32 %s278, 1
      %s280 = scalar_select %p277, %s278, %s279
      %p283 = pneg %p277
      %p284 = scmp.eq.s32.totalorder %s22, 1
      %p285 = por %p283, %p284
      %p286 = scmp.ne.s32.totalorder %s278, %s281
      %p287 = scmp.eq.s32.totalorder %s22, 0
      %p288 = por %p286, %p287
      %p289 = scmp.ne.s32.totalorder %s278, %s281
      %p290 = scmp.eq.s32.totalorder %s27, 1
      %p291 = por %p289, %p290
      %p292 = scmp.ne.s32.totalorder %s281, %s282
      %p293 = scmp.eq.s32.totalorder %s27, 0
      %p294 = por %p292, %p293
      %p295 = scmp.ne.s32.totalorder %s281, %s282
      %p296 = scmp.eq.s32.totalorder %s28, 1
      %p297 = por %p295, %p296
      %p299 = scmp.ne.s32.totalorder %s282, %s298
      %p300 = scmp.eq.s32.totalorder %s28, 0
      %p301 = por %p299, %p300
      %p302 = scmp.le.s32.totalorder 1, %s22
      %p303 = scmp.lt.s32.totalorder %s22, 3
      %p304 = pnand %p302, %p303
      %p305 = pneg %p304
      // Predicated region
      $region9: #{tpu_custom_call.1} parent=5 // pred_check
        _
      $region10: #{tpu_custom_call.1} parent=5 // pred_check_branch
        %307 = sbr.rel (%p304) target = $region12
      $region11: #{tpu_custom_call.1} parent=5 // pred_region
        %s308 = ssub.s32 %s22, 1
        // Predicated region
        $region13: #{tpu_custom_call.1} parent=11 // pred_check
          %p309 = pneg %p121
        $region14: #{tpu_custom_call.1} parent=11 // pred_check_branch
          %311 = sbr.rel (%p309) target = $region16
        $region15: #{tpu_custom_call.1} parent=11 // pred_region
          %s313 = ssub.s32 512, 512
          %314 = vsyncadd [#allocation5], %s313
          %s315 = sshll.u32 [#allocation4], 4
          %s316 = int_to_ptr.vmem [resolvable:$true] %s315
          %321 = dma.hbm_to_vmem [thread:$0]  %s3, 512, %s316, [#allocation5], 128, 128, 8
        $region16: #{tpu_custom_call.1} parent=11 // pred_fallthru
          _
        // Predicated region
        $region17: #{tpu_custom_call.1} parent=11 // pred_check
          %p322 = pneg %p142
        $region18: #{tpu_custom_call.1} parent=11 // pred_check_branch
          %324 = sbr.rel (%p322) target = $region20
        $region19: #{tpu_custom_call.1} parent=11 // pred_region
          _
        $region20: #{tpu_custom_call.1} parent=11 // pred_fallthru
          _
        // Predicated region
        $region21: #{tpu_custom_call.1} parent=11 // pred_check
          %p325 = pneg %p163
        $region22: #{tpu_custom_call.1} parent=11 // pred_check_branch
          %327 = sbr.rel (%p325) target = $region24
        $region23: #{tpu_custom_call.1} parent=11 // pred_region
          %s329 = ssub.s32 4096, 4096
          %330 = vsyncadd [#allocation5], %s329
          %s331 = sshll.u32 [#allocation6], 4
          %s332 = int_to_ptr.vmem [resolvable:$true] %s331
          %337 = dma.hbm_to_vmem [thread:$0]  %s5, 4096, %s332, [#allocation5], 128, 128, 8
        $region24: #{tpu_custom_call.1} parent=11 // pred_fallthru
          _
        // Predicated region
        $region25: #{tpu_custom_call.1} parent=11 // pred_check
          %p338 = pneg %p184
        $region26: #{tpu_custom_call.1} parent=11 // pred_check_branch
          %340 = sbr.rel (%p338) target = $region28
        $region27: #{tpu_custom_call.1} parent=11 // pred_region
          _
        $region28: #{tpu_custom_call.1} parent=11 // pred_fallthru
          _
        // Predicated region
        $region29: #{tpu_custom_call.1} parent=11 // pred_check
          %p341 = pneg %p205
        $region30: #{tpu_custom_call.1} parent=11 // pred_check_branch
          %343 = sbr.rel (%p341) target = $region32
        $region31: #{tpu_custom_call.1} parent=11 // pred_region
          %s345 = ssub.s32 256, 256
          %346 = vsyncadd [#allocation8], %s345
          %s347 = sshll.u32 [#allocation7], 4
          %s348 = int_to_ptr.vmem [resolvable:$true] %s347
          %353 = dma.hbm_to_vmem [thread:$0]  %s7, 256, %s348, [#allocation8], 64, 64, 4
        $region32: #{tpu_custom_call.1} parent=11 // pred_fallthru
          _
        // Predicated region
        $region33: #{tpu_custom_call.1} parent=11 // pred_check
          %p354 = pneg %p226
        $region34: #{tpu_custom_call.1} parent=11 // pred_check_branch
          %356 = sbr.rel (%p354) target = $region36
        $region35: #{tpu_custom_call.1} parent=11 // pred_region
          %s358 = ssub.s32 512, 512
          %359 = vsyncadd [#allocation8], %s358
          %s360 = sshll.u32 [#allocation9], 4
          %s361 = int_to_ptr.vmem [resolvable:$true] %s360
          %366 = dma.hbm_to_vmem [thread:$0]  %s8, 512, %s361, [#allocation8], 128, 128, 8
        $region36: #{tpu_custom_call.1} parent=11 // pred_fallthru
          _
        // Predicated region
        $region37: #{tpu_custom_call.1} parent=11 // pred_check
          %p367 = pneg %p247
        $region38: #{tpu_custom_call.1} parent=11 // pred_check_branch
          %369 = sbr.rel (%p367) target = $region40
        $region39: #{tpu_custom_call.1} parent=11 // pred_region
          _
        $region40: #{tpu_custom_call.1} parent=11 // pred_fallthru
          _
        // Predicated region
        $region41: #{tpu_custom_call.1} parent=11 // pred_check
          %p370 = pneg %p268
        $region42: #{tpu_custom_call.1} parent=11 // pred_check_branch
          %372 = sbr.rel (%p370) target = $region44
        $region43: #{tpu_custom_call.1} parent=11 // pred_region
          _
        $region44: #{tpu_custom_call.1} parent=11 // pred_fallthru
          _
      $region12: #{tpu_custom_call.1} parent=5 // pred_fallthru
        _
      %p373 = scmp.lt.s32.totalorder %s22, 2
      // Predicated region
      $region45: #{tpu_custom_call.1} parent=5 // pred_check
        %p374 = pneg %p373
      $region46: #{tpu_custom_call.1} parent=5 // pred_check_branch
        %376 = sbr.rel (%p374) target = $region48
      $region47: #{tpu_custom_call.1} parent=5 // pred_region
        // Predicated region
        $region49: #{tpu_custom_call.1} parent=47 // pred_check
          %p377 = pneg %p42
        $region50: #{tpu_custom_call.1} parent=47 // pred_check_branch
          %379 = sbr.rel (%p377) target = $region52
        $region51: #{tpu_custom_call.1} parent=47 // pred_region
          %s380 = smul.u32 4, %s22
          %p381 = scmp.lt.s32.totalorder %s380, 7
          %s382 = scalar_select %p381, %s380, 7
          %s383 = smul.addr %s382, 4
          %s384 = scalar_lea.vmem %s0, %s383
          %s385 = smul.u32 4, %s22
        $region52: #{tpu_custom_call.1} parent=47 // pred_fallthru
          _
        // Predicated region
        $region53: #{tpu_custom_call.1} parent=47 // pred_check
          %p386 = pneg %p68
        $region54: #{tpu_custom_call.1} parent=47 // pred_check_branch
          %388 = sbr.rel (%p386) target = $region56
        $region55: #{tpu_custom_call.1} parent=47 // pred_region
          %s389 = smul.u32 4, %s22
          %p390 = scmp.lt.s32.totalorder %s389, 7
          %s391 = scalar_select %p390, %s389, 7
          %s392 = smul.addr %s391, 2
          %s393 = smul.addr %s392, 4
          %s394 = scalar_lea.vmem %s1, %s393
          %s395 = smul.u32 4, %s22
        $region56: #{tpu_custom_call.1} parent=47 // pred_fallthru
          _
        // Predicated region
        $region57: #{tpu_custom_call.1} parent=47 // pred_check
          %p396 = pneg %p94
        $region58: #{tpu_custom_call.1} parent=47 // pred_check_branch
          %398 = sbr.rel (%p396) target = $region60
        $region59: #{tpu_custom_call.1} parent=47 // pred_region
          %s399 = sand.u32 %s84, 1
          %s400 = scalar_lea.sflag [#allocation3], %s399
          %s401 = sand.u32 %s84, 1
          %s402 = smul.addr %s401, 32
          %s403 = scalar_lea.vmem [#allocation2], %s402
          %s404 = smul.u32 4, %s22
          %s406 = ssub.s32 512, 512
          %407 = vsyncadd %s400, %s406
          %s408 = smul.addr %s404, 2
          %s409 = smul.addr %s408, 64
          %s410 = scalar_lea.hbm %s2, %s409
          %s411 = sshll.u32 %s403, 4
          %s412 = int_to_ptr.vmem [resolvable:$true] %s411
          %417 = dma.hbm_to_vmem [thread:$0]  %s410, 512, %s412, %s400, 128, 128, 8
        $region60: #{tpu_custom_call.1} parent=47 // pred_fallthru
          _
      $region48: #{tpu_custom_call.1} parent=5 // pred_fallthru
        _
      %p418 = scmp.le.s32.totalorder 1, %s22
      %p419 = scmp.lt.s32.totalorder %s22, 3
      %p420 = pnand %p418, %p419
      %p421 = pneg %p420
      // Predicated region
      $region61: #{tpu_custom_call.1} parent=5 // pred_check
        _
      $region62: #{tpu_custom_call.1} parent=5 // pred_check_branch
        %423 = sbr.rel (%p420) target = $region64
      $region63: #{tpu_custom_call.1} parent=5 // pred_region
        %s424 = ssub.s32 %s22, 1
        %s425 = sand.u32 %s87, 1
        %s426 = scalar_lea.sflag [#allocation3], %s425
        %s427 = sand.u32 %s87, 1
        %s428 = smul.addr %s427, 32
        %s429 = scalar_lea.vmem [#allocation2], %s428
        // Predicated region
        $region65: #{tpu_custom_call.1} parent=63 // pred_check
          %p430 = pneg %p100
        $region66: #{tpu_custom_call.1} parent=63 // pred_check_branch
          %432 = sbr.rel (%p430) target = $region68
        $region67: #{tpu_custom_call.1} parent=63 // pred_region
          %433 = dma.done %s426, 512
        $region68: #{tpu_custom_call.1} parent=63 // pred_fallthru
          _
        // Predicated region
        $region69: #{tpu_custom_call.1} parent=63 // pred_check
          %p434 = pneg %p121
        $region70: #{tpu_custom_call.1} parent=63 // pred_check_branch
          %436 = sbr.rel (%p434) target = $region72
        $region71: #{tpu_custom_call.1} parent=63 // pred_region
          %437 = dma.done [#allocation5], 512
        $region72: #{tpu_custom_call.1} parent=63 // pred_fallthru
          _
        // Predicated region
        $region73: #{tpu_custom_call.1} parent=63 // pred_check
          %p438 = pneg %p163
        $region74: #{tpu_custom_call.1} parent=63 // pred_check_branch
          %440 = sbr.rel (%p438) target = $region76
        $region75: #{tpu_custom_call.1} parent=63 // pred_region
          %441 = dma.done [#allocation5], 4096
        $region76: #{tpu_custom_call.1} parent=63 // pred_fallthru
          _
        // Predicated region
        $region77: #{tpu_custom_call.1} parent=63 // pred_check
          %p442 = pneg %p205
        $region78: #{tpu_custom_call.1} parent=63 // pred_check_branch
          %444 = sbr.rel (%p442) target = $region80
        $region79: #{tpu_custom_call.1} parent=63 // pred_region
          %445 = dma.done [#allocation8], 256
        $region80: #{tpu_custom_call.1} parent=63 // pred_fallthru
          _
        // Predicated region
        $region81: #{tpu_custom_call.1} parent=63 // pred_check
          %p446 = pneg %p226
        $region82: #{tpu_custom_call.1} parent=63 // pred_check_branch
          %448 = sbr.rel (%p446) target = $region84
        $region83: #{tpu_custom_call.1} parent=63 // pred_region
          %449 = dma.done [#allocation8], 512
        $region84: #{tpu_custom_call.1} parent=63 // pred_fallthru
          _
        %s450 = smul.u32 4, %s27
        %p451 = scmp.lt.s32.totalorder %s450, 7
        %s452 = scalar_select %p451, %s450, 7
        %s453 = smul.addr %s452, 4
        %s454 = scalar_lea.vmem %s0, %s453
        %p455 = pneg %p48
        %p456 = pneg %p45
        %s457 = smul.u32 4, %s27
        %p458 = scmp.lt.s32.totalorder %s457, 7
        %s459 = scalar_select %p458, %s457, 7
        %s460 = smul.addr %s459, 2
        %s461 = smul.addr %s460, 4
        %s462 = scalar_lea.vmem %s1, %s461
        %p463 = pneg %p74
        %p464 = pneg %p71
        %s465 = sand.u32 %s87, 1
        %s466 = scalar_lea.sflag [#allocation3], %s465
        %s467 = sand.u32 %s87, 1
        %s468 = smul.addr %s467, 32
        %s469 = scalar_lea.vmem [#allocation2], %s468
        %p470 = pneg %p100
        %p471 = pneg %p97
        %p472 = pneg %p121
        %p473 = pneg %p118
        %p474 = pneg %p142
        %p475 = pneg %p139
        %p476 = pneg %p163
        %p477 = pneg %p160
        %p478 = pneg %p184
        %p479 = pneg %p181
        %p480 = pneg %p205
        %p481 = pneg %p202
        %p482 = pneg %p226
        %p483 = pneg %p223
        %p484 = pneg %p247
        %p485 = pneg %p244
        %p486 = pneg %p268
        %p487 = pneg %p265
        %p488 = pneg %p294
        %p489 = pneg %p291
        %s490 = smul.u32 4, %s27
        %p491 = scmp.lt.s32.totalorder %s490, 7
        %s492 = scalar_select %p491, %s490, 7
        %s493 = smul.addr %s492, 8
        %s494 = scalar_lea.vmem %s11, %s493
        %s495 = smul.u32 4, %s27
        %p496 = scmp.lt.s32.totalorder %s495, 7
        %s497 = scalar_select %p496, %s495, 7
        %s498 = smul.addr %s497, 4
        %s499 = scalar_lea.vmem %s0, %s498
        %s500 = smul.u32 4, %s27
        %s501 = smul.u32 4, %s27
        %p502 = scmp.lt.s32.totalorder %s501, 7
        %s503 = scalar_select %p502, %s501, 7
        %s504 = smul.addr %s503, 2
        %s505 = smul.addr %s504, 4
        %s506 = scalar_lea.vmem %s1, %s505
        %s507 = smul.u32 4, %s27
        %s508 = smul.u32 4, %s27
        %s509 = smul.u32 4, %s27
        %p510 = scmp.lt.s32.totalorder %s509, 7
        %s511 = scalar_select %p510, %s509, 7
        %s512 = smul.addr %s511, 8
        %s513 = scalar_lea.vmem %s11, %s512
        %s514 = smul.u32 4, %s27
        %v516 = vld [vmem:[%s499] sm:$0xf]
        %v517 = vld [vmem:[%s499 + $0x4] sm:$0xf]
        %v518 = vld [vmem:[%s499 + $0x8] sm:$0xf]
        %v519 = vld [vmem:[%s499 + $0xc] sm:$0xf]
        %v520 = vld [vmem:[%s506] sm:$0xff]
        %v521 = vld [vmem:[%s506 + $0x8] sm:$0xff]
        %v522 = vld [vmem:[%s506 + $0x10] sm:$0xff]
        %v523 = vld [vmem:[%s506 + $0x18] sm:$0xff]
        %v524 = vld [vmem:[%s429] sm:$0xff]
        %v525 = vld [vmem:[%s429 + $0x8] sm:$0xff]
        %v526 = vld [vmem:[%s429 + $0x10] sm:$0xff]
        %v527 = vld [vmem:[%s429 + $0x18] sm:$0xff]
        %v528 = vld [vmem:[#allocation4] sm:$0xff]
        %v529 = vld [vmem:[#allocation4 + $0x8] sm:$0xff]
        %v530 = vld [vmem:[#allocation4 + $0x10] sm:$0xff]
        %v531 = vld [vmem:[#allocation4 + $0x18] sm:$0xff]
        %v536 = vunpack.c.l.b16 %v516
        %v537 = vunpack.c.l.b16 %v517
        %v538 = vunpack.c.l.b16 %v518
        %v539 = vunpack.c.l.b16 %v519
        %v540 = vpack.c.b16 %v537, %v536
        %v541 = vpack.c.b16 %v539, %v538
        %v546 = vunpack.c.l.b16 %v528
        %v547 = vunpack.c.h.b16 %v528
        %v548 = vunpack.c.l.b16 %v529
        %v549 = vunpack.c.h.b16 %v529
        %v550 = vunpack.c.l.b16 %v530
        %v551 = vunpack.c.h.b16 %v530
        %v552 = vunpack.c.l.b16 %v531
        %v553 = vunpack.c.h.b16 %v531
        %v554 = vpack.c.b16 %v548, %v546
        %v555 = vpack.c.b16 %v549, %v547
        %v556 = vpack.c.b16 %v552, %v550
        %v557 = vpack.c.b16 %v553, %v551
        %vm562 = vcmask 261120
        %v564 = vsel %vm562, %v540, 0
        %v567 = vsel %vm562, %v541, 0
        %569 = vmatprep.subr.bf16.mxu0 %v555
        %570 = vmatpush1.bf16.msra.mxu0 %v554
        %571 = vmatprep.subr.bf16.mxu0 %v557
        %572 = vmatpush1.bf16.msra.mxu0 %v556
        %573 = vmatprep.subr.bf16.mxu0 0
        %574 = vmatpush1.bf16.msra.mxu0 0
        %575 = vmatprep.subr.bf16.mxu0 0
        %576 = vmatpush1.bf16.msra.mxu0 0
        %577 = vmatprep.subr.bf16.mxu0 0
        %578 = vmatpush1.bf16.msra.mxu0 0
        %579 = vmatprep.subr.bf16.mxu0 0
        %580 = vmatpush1.bf16.msra.mxu0 0
        %581 = vmatprep.subr.bf16.mxu0 0
        %582 = vmatpush1.bf16.msra.mxu0 0
        %583 = vmatprep.subr.bf16.mxu0 0
        %584 = vmatpush1.bf16.msra.mxu0 0
        %585 = vmatprep.subr.bf16.mxu0 0
        %586 = vmatpush1.bf16.msra.mxu0 0
        %587 = vmatprep.subr.bf16.mxu0 0
        %588 = vmatpush1.bf16.msra.mxu0 0
        %589 = vmatprep.subr.bf16.mxu0 0
        %590 = vmatpush1.bf16.msra.mxu0 0
        %591 = vmatprep.subr.bf16.mxu0 0
        %592 = vmatpush1.bf16.msra.mxu0 0
        %593 = vmatprep.subr.bf16.mxu0 0
        %594 = vmatpush1.bf16.msra.mxu0 0
        %595 = vmatprep.subr.bf16.mxu0 0
        %596 = vmatpush1.bf16.msra.mxu0 0
        %597 = vmatprep.subr.bf16.mxu0 0
        %598 = vmatpush1.bf16.msra.mxu0 0
        %599 = vmatprep.subr.bf16.mxu0 0
        %600 = vmatpush1.bf16.msra.mxu0 0
        %601 = vmatprep.mubr.bf16.mxu0 0
        %602 = vmatmul.mubr.bf16.gmra.mrb[0].mxu0 %v564
        %v603 = vpop.f32.mrb[0].mxu0
        %v604 = vadd.f32 0.0, %v603
        %v605 = vpop.f32.mrb[0].mxu0
        %v606 = vadd.f32 0.0, %v605
        %v607 = vpop.f32.mrb[0].mxu0
        %v608 = vadd.f32 0.0, %v607
        %v609 = vpop.f32.mrb[0].mxu0
        %v610 = vadd.f32 0.0, %v609
        %611 = vmatprep.mubr.bf16.mxu0 0
        %612 = vmatmul.mubr.bf16.gmra.mrb[0].mxu0 %v567
        %v613 = vpop.f32.mrb[0].mxu0
        %v614 = vadd.f32 0.0, %v613
        %v615 = vpop.f32.mrb[0].mxu0
        %v616 = vadd.f32 0.0, %v615
        %v617 = vpop.f32.mrb[0].mxu0
        %v618 = vadd.f32 0.0, %v617
        %v619 = vpop.f32.mrb[0].mxu0
        %v620 = vadd.f32 0.0, %v619
        %621 = vdwg.mxu0
        %v622 = vld [vmem:[%s4] sm:$0xff]
        %v623 = vld [vmem:[%s4 + $0x8] sm:$0xff]
        %v624 = vld [vmem:[%s4 + $0x10] sm:$0xff]
        %v625 = vld [vmem:[%s4 + $0x18] sm:$0xff]
        %v626 = vld [vmem:[%s4 + $0x20] sm:$0xff]
        %v627 = vld [vmem:[%s4 + $0x28] sm:$0xff]
        %v628 = vld [vmem:[%s4 + $0x30] sm:$0xff]
        %v629 = vld [vmem:[%s4 + $0x38] sm:$0xff]
        %v630 = vld [vmem:[%s4 + $0x40] sm:$0xff]
        %v631 = vld [vmem:[%s4 + $0x48] sm:$0xff]
        %v632 = vld [vmem:[%s4 + $0x50] sm:$0xff]
        %v633 = vld [vmem:[%s4 + $0x58] sm:$0xff]
        %v634 = vld [vmem:[%s4 + $0x60] sm:$0xff]
        %v635 = vld [vmem:[%s4 + $0x68] sm:$0xff]
        %v636 = vld [vmem:[%s4 + $0x70] sm:$0xff]
        %v637 = vld [vmem:[%s4 + $0x78] sm:$0xff]
        %v638 = vld [vmem:[%s4 + $0x80] sm:$0xff]
        %v639 = vld [vmem:[%s4 + $0x88] sm:$0xff]
        %v640 = vld [vmem:[%s4 + $0x90] sm:$0xff]
        %v641 = vld [vmem:[%s4 + $0x98] sm:$0xff]
        %v642 = vld [vmem:[%s4 + $0xa0] sm:$0xff]
        %v643 = vld [vmem:[%s4 + $0xa8] sm:$0xff]
        %v644 = vld [vmem:[%s4 + $0xb0] sm:$0xff]
        %v645 = vld [vmem:[%s4 + $0xb8] sm:$0xff]
        %v646 = vld [vmem:[%s4 + $0xc0] sm:$0xff]
        %v647 = vld [vmem:[%s4 + $0xc8] sm:$0xff]
        %v648 = vld [vmem:[%s4 + $0xd0] sm:$0xff]
        %v649 = vld [vmem:[%s4 + $0xd8] sm:$0xff]
        %v650 = vld [vmem:[%s4 + $0xe0] sm:$0xff]
        %v651 = vld [vmem:[%s4 + $0xe8] sm:$0xff]
        %v652 = vld [vmem:[%s4 + $0xf0] sm:$0xff]
        %v653 = vld [vmem:[%s4 + $0xf8] sm:$0xff]
        %v658 = vunpack.c.l.b16 %v520
        %v659 = vunpack.c.h.b16 %v520
        %v660 = vunpack.c.l.b16 %v521
        %v661 = vunpack.c.h.b16 %v521
        %v662 = vunpack.c.l.b16 %v522
        %v663 = vunpack.c.h.b16 %v522
        %v664 = vunpack.c.l.b16 %v523
        %v665 = vunpack.c.h.b16 %v523
        %v666 = vpack.c.b16 %v660, %v658
        %v667 = vpack.c.b16 %v661, %v659
        %v668 = vpack.c.b16 %v664, %v662
        %v669 = vpack.c.b16 %v665, %v663
        %v706 = vunpack.c.l.b16 %v622
        %v707 = vunpack.c.h.b16 %v622
        %v708 = vunpack.c.l.b16 %v623
        %v709 = vunpack.c.h.b16 %v623
        %v710 = vunpack.c.l.b16 %v624
        %v711 = vunpack.c.h.b16 %v624
        %v712 = vunpack.c.l.b16 %v625
        %v713 = vunpack.c.h.b16 %v625
        %v714 = vunpack.c.l.b16 %v626
        %v715 = vunpack.c.h.b16 %v626
        %v716 = vunpack.c.l.b16 %v627
        %v717 = vunpack.c.h.b16 %v627
        %v718 = vunpack.c.l.b16 %v628
        %v719 = vunpack.c.h.b16 %v628
        %v720 = vunpack.c.l.b16 %v629
        %v721 = vunpack.c.h.b16 %v629
        %v722 = vunpack.c.l.b16 %v630
        %v723 = vunpack.c.h.b16 %v630
        %v724 = vunpack.c.l.b16 %v631
        %v725 = vunpack.c.h.b16 %v631
        %v726 = vunpack.c.l.b16 %v632
        %v727 = vunpack.c.h.b16 %v632
        %v728 = vunpack.c.l.b16 %v633
        %v729 = vunpack.c.h.b16 %v633
        %v730 = vunpack.c.l.b16 %v634
        %v731 = vunpack.c.h.b16 %v634
        %v732 = vunpack.c.l.b16 %v635
        %v733 = vunpack.c.h.b16 %v635
        %v734 = vunpack.c.l.b16 %v636
        %v735 = vunpack.c.h.b16 %v636
        %v736 = vunpack.c.l.b16 %v637
        %v737 = vunpack.c.h.b16 %v637
        %v738 = vunpack.c.l.b16 %v638
        %v739 = vunpack.c.h.b16 %v638
        %v740 = vunpack.c.l.b16 %v639
        %v741 = vunpack.c.h.b16 %v639
        %v742 = vunpack.c.l.b16 %v640
        %v743 = vunpack.c.h.b16 %v640
        %v744 = vunpack.c.l.b16 %v641
        %v745 = vunpack.c.h.b16 %v641
        %v746 = vunpack.c.l.b16 %v642
        %v747 = vunpack.c.h.b16 %v642
        %v748 = vunpack.c.l.b16 %v643
        %v749 = vunpack.c.h.b16 %v643
        %v750 = vunpack.c.l.b16 %v644
        %v751 = vunpack.c.h.b16 %v644
        %v752 = vunpack.c.l.b16 %v645
        %v753 = vunpack.c.h.b16 %v645
        %v754 = vunpack.c.l.b16 %v646
        %v755 = vunpack.c.h.b16 %v646
        %v756 = vunpack.c.l.b16 %v647
        %v757 = vunpack.c.h.b16 %v647
        %v758 = vunpack.c.l.b16 %v648
        %v759 = vunpack.c.h.b16 %v648
        %v760 = vunpack.c.l.b16 %v649
        %v761 = vunpack.c.h.b16 %v649
        %v762 = vunpack.c.l.b16 %v650
        %v763 = vunpack.c.h.b16 %v650
        %v764 = vunpack.c.l.b16 %v651
        %v765 = vunpack.c.h.b16 %v651
        %v766 = vunpack.c.l.b16 %v652
        %v767 = vunpack.c.h.b16 %v652
        %v768 = vunpack.c.l.b16 %v653
        %v769 = vunpack.c.h.b16 %v653
        %v770 = vpack.c.b16 %v708, %v706
        %v771 = vpack.c.b16 %v709, %v707
        %v772 = vpack.c.b16 %v712, %v710
        %v773 = vpack.c.b16 %v713, %v711
        %v774 = vpack.c.b16 %v716, %v714
        %v775 = vpack.c.b16 %v717, %v715
        %v776 = vpack.c.b16 %v720, %v718
        %v777 = vpack.c.b16 %v721, %v719
        %v778 = vpack.c.b16 %v724, %v722
        %v779 = vpack.c.b16 %v725, %v723
        %v780 = vpack.c.b16 %v728, %v726
        %v781 = vpack.c.b16 %v729, %v727
        %v782 = vpack.c.b16 %v732, %v730
        %v783 = vpack.c.b16 %v733, %v731
        %v784 = vpack.c.b16 %v736, %v734
        %v785 = vpack.c.b16 %v737, %v735
        %v786 = vpack.c.b16 %v740, %v738
        %v787 = vpack.c.b16 %v741, %v739
        %v788 = vpack.c.b16 %v744, %v742
        %v789 = vpack.c.b16 %v745, %v743
        %v790 = vpack.c.b16 %v748, %v746
        %v791 = vpack.c.b16 %v749, %v747
        %v792 = vpack.c.b16 %v752, %v750
        %v793 = vpack.c.b16 %v753, %v751
        %v794 = vpack.c.b16 %v756, %v754
        %v795 = vpack.c.b16 %v757, %v755
        %v796 = vpack.c.b16 %v760, %v758
        %v797 = vpack.c.b16 %v761, %v759
        %v798 = vpack.c.b16 %v764, %v762
        %v799 = vpack.c.b16 %v765, %v763
        %v800 = vpack.c.b16 %v768, %v766
        %v801 = vpack.c.b16 %v769, %v767
        %834 = vmatprep.subr.bf16.mxu0 %v771
        %835 = vmatpush1.bf16.msra.mxu0 %v770
        %836 = vmatprep.subr.bf16.mxu0 %v773
        %837 = vmatpush1.bf16.msra.mxu0 %v772
        %838 = vmatprep.subr.bf16.mxu0 %v775
        %839 = vmatpush1.bf16.msra.mxu0 %v774
        %840 = vmatprep.subr.bf16.mxu0 %v777
        %841 = vmatpush1.bf16.msra.mxu0 %v776
        %842 = vmatprep.subr.bf16.mxu0 %v779
        %843 = vmatpush1.bf16.msra.mxu0 %v778
        %844 = vmatprep.subr.bf16.mxu0 %v781
        %845 = vmatpush1.bf16.msra.mxu0 %v780
        %846 = vmatprep.subr.bf16.mxu0 %v783
        %847 = vmatpush1.bf16.msra.mxu0 %v782
        %848 = vmatprep.subr.bf16.mxu0 %v785
        %849 = vmatpush1.bf16.msra.mxu0 %v784
        %850 = vmatprep.subr.bf16.mxu0 %v787
        %851 = vmatpush1.bf16.msra.mxu0 %v786
        %852 = vmatprep.subr.bf16.mxu0 %v789
        %853 = vmatpush1.bf16.msra.mxu0 %v788
        %854 = vmatprep.subr.bf16.mxu0 %v791
        %855 = vmatpush1.bf16.msra.mxu0 %v790
        %856 = vmatprep.subr.bf16.mxu0 %v793
        %857 = vmatpush1.bf16.msra.mxu0 %v792
        %858 = vmatprep.subr.bf16.mxu0 %v795
        %859 = vmatpush1.bf16.msra.mxu0 %v794
        %860 = vmatprep.subr.bf16.mxu0 %v797
        %861 = vmatpush1.bf16.msra.mxu0 %v796
        %862 = vmatprep.subr.bf16.mxu0 %v799
        %863 = vmatpush1.bf16.msra.mxu0 %v798
        %864 = vmatprep.subr.bf16.mxu0 %v801
        %865 = vmatpush1.bf16.msra.mxu0 %v800
        %866 = vmatprep.mubr.bf16.mxu0 %v667
        %867 = vmatmul.mubr.bf16.gmra.mrb[0].mxu0 %v666
        %v868 = vpop.f32.mrb[0].mxu0
        %v869 = vadd.f32 0.0, %v868
        %v870 = vpop.f32.mrb[0].mxu0
        %v871 = vadd.f32 0.0, %v870
        %v872 = vpop.f32.mrb[0].mxu0
        %v873 = vadd.f32 0.0, %v872
        %v874 = vpop.f32.mrb[0].mxu0
        %v875 = vadd.f32 0.0, %v874
        %876 = vmatprep.mubr.bf16.mxu0 %v669
        %877 = vmatmul.mubr.bf16.gmra.mrb[0].mxu0 %v668
        %v878 = vpop.f32.mrb[0].mxu0
        %v879 = vadd.f32 0.0, %v878
        %v880 = vpop.f32.mrb[0].mxu0
        %v881 = vadd.f32 0.0, %v880
        %v882 = vpop.f32.mrb[0].mxu0
        %v883 = vadd.f32 0.0, %v882
        %v884 = vpop.f32.mrb[0].mxu0
        %v885 = vadd.f32 0.0, %v884
        %886 = vdwg.mxu0
        %v887 = vld [vmem:[#allocation6] sm:$0xff]
        %v888 = vld [vmem:[#allocation6 + $0x8] sm:$0xff]
        %v889 = vld [vmem:[#allocation6 + $0x10] sm:$0xff]
        %v890 = vld [vmem:[#allocation6 + $0x18] sm:$0xff]
        %v891 = vld [vmem:[#allocation6 + $0x20] sm:$0xff]
        %v892 = vld [vmem:[#allocation6 + $0x28] sm:$0xff]
        %v893 = vld [vmem:[#allocation6 + $0x30] sm:$0xff]
        %v894 = vld [vmem:[#allocation6 + $0x38] sm:$0xff]
        %v895 = vld [vmem:[#allocation6 + $0x40] sm:$0xff]
        %v896 = vld [vmem:[#allocation6 + $0x48] sm:$0xff]
        %v897 = vld [vmem:[#allocation6 + $0x50] sm:$0xff]
        %v898 = vld [vmem:[#allocation6 + $0x58] sm:$0xff]
        %v899 = vld [vmem:[#allocation6 + $0x60] sm:$0xff]
        %v900 = vld [vmem:[#allocation6 + $0x68] sm:$0xff]
        %v901 = vld [vmem:[#allocation6 + $0x70] sm:$0xff]
        %v902 = vld [vmem:[#allocation6 + $0x78] sm:$0xff]
        %v903 = vld [vmem:[#allocation6 + $0x80] sm:$0xff]
        %v904 = vld [vmem:[#allocation6 + $0x88] sm:$0xff]
        %v905 = vld [vmem:[#allocation6 + $0x90] sm:$0xff]
        %v906 = vld [vmem:[#allocation6 + $0x98] sm:$0xff]
        %v907 = vld [vmem:[#allocation6 + $0xa0] sm:$0xff]
        %v908 = vld [vmem:[#allocation6 + $0xa8] sm:$0xff]
        %v909 = vld [vmem:[#allocation6 + $0xb0] sm:$0xff]
        %v910 = vld [vmem:[#allocation6 + $0xb8] sm:$0xff]
        %v911 = vld [vmem:[#allocation6 + $0xc0] sm:$0xff]
        %v912 = vld [vmem:[#allocation6 + $0xc8] sm:$0xff]
        %v913 = vld [vmem:[#allocation6 + $0xd0] sm:$0xff]
        %v914 = vld [vmem:[#allocation6 + $0xd8] sm:$0xff]
        %v915 = vld [vmem:[#allocation6 + $0xe0] sm:$0xff]
        %v916 = vld [vmem:[#allocation6 + $0xe8] sm:$0xff]
        %v917 = vld [vmem:[#allocation6 + $0xf0] sm:$0xff]
        %v918 = vld [vmem:[#allocation6 + $0xf8] sm:$0xff]
        %v923 = vunpack.c.l.b16 %v524
        %v924 = vunpack.c.h.b16 %v524
        %v925 = vunpack.c.l.b16 %v525
        %v926 = vunpack.c.h.b16 %v525
        %v927 = vunpack.c.l.b16 %v526
        %v928 = vunpack.c.h.b16 %v526
        %v929 = vunpack.c.l.b16 %v527
        %v930 = vunpack.c.h.b16 %v527
        %v931 = vpack.c.b16 %v925, %v923
        %v932 = vpack.c.b16 %v926, %v924
        %v933 = vpack.c.b16 %v929, %v927
        %v934 = vpack.c.b16 %v930, %v928
        %v971 = vunpack.c.l.b16 %v887
        %v972 = vunpack.c.h.b16 %v887
        %v973 = vunpack.c.l.b16 %v888
        %v974 = vunpack.c.h.b16 %v888
        %v975 = vunpack.c.l.b16 %v889
        %v976 = vunpack.c.h.b16 %v889
        %v977 = vunpack.c.l.b16 %v890
        %v978 = vunpack.c.h.b16 %v890
        %v979 = vunpack.c.l.b16 %v891
        %v980 = vunpack.c.h.b16 %v891
        %v981 = vunpack.c.l.b16 %v892
        %v982 = vunpack.c.h.b16 %v892
        %v983 = vunpack.c.l.b16 %v893
        %v984 = vunpack.c.h.b16 %v893
        %v985 = vunpack.c.l.b16 %v894
        %v986 = vunpack.c.h.b16 %v894
        %v987 = vunpack.c.l.b16 %v895
        %v988 = vunpack.c.h.b16 %v895
        %v989 = vunpack.c.l.b16 %v896
        %v990 = vunpack.c.h.b16 %v896
        %v991 = vunpack.c.l.b16 %v897
        %v992 = vunpack.c.h.b16 %v897
        %v993 = vunpack.c.l.b16 %v898
        %v994 = vunpack.c.h.b16 %v898
        %v995 = vunpack.c.l.b16 %v899
        %v996 = vunpack.c.h.b16 %v899
        %v997 = vunpack.c.l.b16 %v900
        %v998 = vunpack.c.h.b16 %v900
        %v999 = vunpack.c.l.b16 %v901
        %v1000 = vunpack.c.h.b16 %v901
        %v1001 = vunpack.c.l.b16 %v902
        %v1002 = vunpack.c.h.b16 %v902
        %v1003 = vunpack.c.l.b16 %v903
        %v1004 = vunpack.c.h.b16 %v903
        %v1005 = vunpack.c.l.b16 %v904
        %v1006 = vunpack.c.h.b16 %v904
        %v1007 = vunpack.c.l.b16 %v905
        %v1008 = vunpack.c.h.b16 %v905
        %v1009 = vunpack.c.l.b16 %v906
        %v1010 = vunpack.c.h.b16 %v906
        %v1011 = vunpack.c.l.b16 %v907
        %v1012 = vunpack.c.h.b16 %v907
        %v1013 = vunpack.c.l.b16 %v908
        %v1014 = vunpack.c.h.b16 %v908
        %v1015 = vunpack.c.l.b16 %v909
        %v1016 = vunpack.c.h.b16 %v909
        %v1017 = vunpack.c.l.b16 %v910
        %v1018 = vunpack.c.h.b16 %v910
        %v1019 = vunpack.c.l.b16 %v911
        %v1020 = vunpack.c.h.b16 %v911
        %v1021 = vunpack.c.l.b16 %v912
        %v1022 = vunpack.c.h.b16 %v912
        %v1023 = vunpack.c.l.b16 %v913
        %v1024 = vunpack.c.h.b16 %v913
        %v1025 = vunpack.c.l.b16 %v914
        %v1026 = vunpack.c.h.b16 %v914
        %v1027 = vunpack.c.l.b16 %v915
        %v1028 = vunpack.c.h.b16 %v915
        %v1029 = vunpack.c.l.b16 %v916
        %v1030 = vunpack.c.h.b16 %v916
        %v1031 = vunpack.c.l.b16 %v917
        %v1032 = vunpack.c.h.b16 %v917
        %v1033 = vunpack.c.l.b16 %v918
        %v1034 = vunpack.c.h.b16 %v918
        %v1035 = vpack.c.b16 %v973, %v971
        %v1036 = vpack.c.b16 %v974, %v972
        %v1037 = vpack.c.b16 %v977, %v975
        %v1038 = vpack.c.b16 %v978, %v976
        %v1039 = vpack.c.b16 %v981, %v979
        %v1040 = vpack.c.b16 %v982, %v980
        %v1041 = vpack.c.b16 %v985, %v983
        %v1042 = vpack.c.b16 %v986, %v984
        %v1043 = vpack.c.b16 %v989, %v987
        %v1044 = vpack.c.b16 %v990, %v988
        %v1045 = vpack.c.b16 %v993, %v991
        %v1046 = vpack.c.b16 %v994, %v992
        %v1047 = vpack.c.b16 %v997, %v995
        %v1048 = vpack.c.b16 %v998, %v996
        %v1049 = vpack.c.b16 %v1001, %v999
        %v1050 = vpack.c.b16 %v1002, %v1000
        %v1051 = vpack.c.b16 %v1005, %v1003
        %v1052 = vpack.c.b16 %v1006, %v1004
        %v1053 = vpack.c.b16 %v1009, %v1007
        %v1054 = vpack.c.b16 %v1010, %v1008
        %v1055 = vpack.c.b16 %v1013, %v1011
        %v1056 = vpack.c.b16 %v1014, %v1012
        %v1057 = vpack.c.b16 %v1017, %v1015
        %v1058 = vpack.c.b16 %v1018, %v1016
        %v1059 = vpack.c.b16 %v1021, %v1019
        %v1060 = vpack.c.b16 %v1022, %v1020
        %v1061 = vpack.c.b16 %v1025, %v1023
        %v1062 = vpack.c.b16 %v1026, %v1024
        %v1063 = vpack.c.b16 %v1029, %v1027
        %v1064 = vpack.c.b16 %v1030, %v1028
        %v1065 = vpack.c.b16 %v1033, %v1031
        %v1066 = vpack.c.b16 %v1034, %v1032
        %1099 = vmatprep.subr.bf16.mxu0 %v1036
        %1100 = vmatpush1.bf16.msra.mxu0 %v1035
        %1101 = vmatprep.subr.bf16.mxu0 %v1038
        %1102 = vmatpush1.bf16.msra.mxu0 %v1037
        %1103 = vmatprep.subr.bf16.mxu0 %v1040
        %1104 = vmatpush1.bf16.msra.mxu0 %v1039
        %1105 = vmatprep.subr.bf16.mxu0 %v1042
        %1106 = vmatpush1.bf16.msra.mxu0 %v1041
        %1107 = vmatprep.subr.bf16.mxu0 %v1044
        %1108 = vmatpush1.bf16.msra.mxu0 %v1043
        %1109 = vmatprep.subr.bf16.mxu0 %v1046
        %1110 = vmatpush1.bf16.msra.mxu0 %v1045
        %1111 = vmatprep.subr.bf16.mxu0 %v1048
        %1112 = vmatpush1.bf16.msra.mxu0 %v1047
        %1113 = vmatprep.subr.bf16.mxu0 %v1050
        %1114 = vmatpush1.bf16.msra.mxu0 %v1049
        %1115 = vmatprep.subr.bf16.mxu0 %v1052
        %1116 = vmatpush1.bf16.msra.mxu0 %v1051
        %1117 = vmatprep.subr.bf16.mxu0 %v1054
        %1118 = vmatpush1.bf16.msra.mxu0 %v1053
        %1119 = vmatprep.subr.bf16.mxu0 %v1056
        %1120 = vmatpush1.bf16.msra.mxu0 %v1055
        %1121 = vmatprep.subr.bf16.mxu0 %v1058
        %1122 = vmatpush1.bf16.msra.mxu0 %v1057
        %1123 = vmatprep.subr.bf16.mxu0 %v1060
        %1124 = vmatpush1.bf16.msra.mxu0 %v1059
        %1125 = vmatprep.subr.bf16.mxu0 %v1062
        %1126 = vmatpush1.bf16.msra.mxu0 %v1061
        %1127 = vmatprep.subr.bf16.mxu0 %v1064
        %1128 = vmatpush1.bf16.msra.mxu0 %v1063
        %1129 = vmatprep.subr.bf16.mxu0 %v1066
        %1130 = vmatpush1.bf16.msra.mxu0 %v1065
        %1131 = vmatprep.mubr.bf16.mxu0 %v932
        %1132 = vmatmul.mubr.bf16.gmra.mrb[0].mxu0 %v931
        %v1133 = vpop.f32.mrb[0].mxu0
        %v1134 = vadd.f32 0.0, %v1133
        %v1135 = vpop.f32.mrb[0].mxu0
        %v1136 = vadd.f32 0.0, %v1135
        %v1137 = vpop.f32.mrb[0].mxu0
        %v1138 = vadd.f32 0.0, %v1137
        %v1139 = vpop.f32.mrb[0].mxu0
        %v1140 = vadd.f32 0.0, %v1139
        %1141 = vmatprep.mubr.bf16.mxu0 %v934
        %1142 = vmatmul.mubr.bf16.gmra.mrb[0].mxu0 %v933
        %v1143 = vpop.f32.mrb[0].mxu0
        %v1144 = vadd.f32 0.0, %v1143
        %v1145 = vpop.f32.mrb[0].mxu0
        %v1146 = vadd.f32 0.0, %v1145
        %v1147 = vpop.f32.mrb[0].mxu0
        %v1148 = vadd.f32 0.0, %v1147
        %v1149 = vpop.f32.mrb[0].mxu0
        %v1150 = vadd.f32 0.0, %v1149
        %1151 = vdwg.mxu0
        %v1152 = vmul.f32 %v604, %v869
        %v1153 = vmul.f32 %v606, %v871
        %v1154 = vmul.f32 %v608, %v873
        %v1155 = vmul.f32 %v610, %v875
        %v1156 = vmul.f32 %v614, %v879
        %v1157 = vmul.f32 %v616, %v881
        %v1158 = vmul.f32 %v618, %v883
        %v1159 = vmul.f32 %v620, %v885
        %v1160 = vpack.c.bf16 %v1154, %v1152
        %v1161 = vpack.c.bf16 %v1155, %v1153
        %v1162 = vpack.c.bf16 %v1158, %v1156
        %v1163 = vpack.c.bf16 %v1159, %v1157
        %v1164 = vld [vmem:[%s6] sm:$0xf]
        %v1165 = vld [vmem:[%s6 + $0x4] sm:$0xf]
        %v1166 = vld [vmem:[%s6 + $0x8] sm:$0xf]
        %v1167 = vld [vmem:[%s6 + $0xc] sm:$0xf]
        %v1168 = vld [vmem:[%s6 + $0x10] sm:$0xf]
        %v1169 = vld [vmem:[%s6 + $0x14] sm:$0xf]
        %v1170 = vld [vmem:[%s6 + $0x18] sm:$0xf]
        %v1171 = vld [vmem:[%s6 + $0x1c] sm:$0xf]
        %v1172 = vld [vmem:[%s6 + $0x20] sm:$0xf]
        %v1173 = vld [vmem:[%s6 + $0x24] sm:$0xf]
        %v1174 = vld [vmem:[%s6 + $0x28] sm:$0xf]
        %v1175 = vld [vmem:[%s6 + $0x2c] sm:$0xf]
        %v1176 = vld [vmem:[%s6 + $0x30] sm:$0xf]
        %v1177 = vld [vmem:[%s6 + $0x34] sm:$0xf]
        %v1178 = vld [vmem:[%s6 + $0x38] sm:$0xf]
        %v1179 = vld [vmem:[%s6 + $0x3c] sm:$0xf]
        %v1180 = vld [vmem:[%s6 + $0x40] sm:$0xf]
        %v1181 = vld [vmem:[%s6 + $0x44] sm:$0xf]
        %v1182 = vld [vmem:[%s6 + $0x48] sm:$0xf]
        %v1183 = vld [vmem:[%s6 + $0x4c] sm:$0xf]
        %v1184 = vld [vmem:[%s6 + $0x50] sm:$0xf]
        %v1185 = vld [vmem:[%s6 + $0x54] sm:$0xf]
        %v1186 = vld [vmem:[%s6 + $0x58] sm:$0xf]
        %v1187 = vld [vmem:[%s6 + $0x5c] sm:$0xf]
        %v1188 = vld [vmem:[%s6 + $0x60] sm:$0xf]
        %v1189 = vld [vmem:[%s6 + $0x64] sm:$0xf]
        %v1190 = vld [vmem:[%s6 + $0x68] sm:$0xf]
        %v1191 = vld [vmem:[%s6 + $0x6c] sm:$0xf]
        %v1192 = vld [vmem:[%s6 + $0x70] sm:$0xf]
        %v1193 = vld [vmem:[%s6 + $0x74] sm:$0xf]
        %v1194 = vld [vmem:[%s6 + $0x78] sm:$0xf]
        %v1195 = vld [vmem:[%s6 + $0x7c] sm:$0xf]
        %v1228 = vunpack.c.l.b16 %v1164
        %v1229 = vunpack.c.l.b16 %v1165
        %v1230 = vunpack.c.l.b16 %v1166
        %v1231 = vunpack.c.l.b16 %v1167
        %v1232 = vunpack.c.l.b16 %v1168
        %v1233 = vunpack.c.l.b16 %v1169
        %v1234 = vunpack.c.l.b16 %v1170
        %v1235 = vunpack.c.l.b16 %v1171
        %v1236 = vunpack.c.l.b16 %v1172
        %v1237 = vunpack.c.l.b16 %v1173
        %v1238 = vunpack.c.l.b16 %v1174
        %v1239 = vunpack.c.l.b16 %v1175
        %v1240 = vunpack.c.l.b16 %v1176
        %v1241 = vunpack.c.l.b16 %v1177
        %v1242 = vunpack.c.l.b16 %v1178
        %v1243 = vunpack.c.l.b16 %v1179
        %v1244 = vunpack.c.l.b16 %v1180
        %v1245 = vunpack.c.l.b16 %v1181
        %v1246 = vunpack.c.l.b16 %v1182
        %v1247 = vunpack.c.l.b16 %v1183
        %v1248 = vunpack.c.l.b16 %v1184
        %v1249 = vunpack.c.l.b16 %v1185
        %v1250 = vunpack.c.l.b16 %v1186
        %v1251 = vunpack.c.l.b16 %v1187
        %v1252 = vunpack.c.l.b16 %v1188
        %v1253 = vunpack.c.l.b16 %v1189
        %v1254 = vunpack.c.l.b16 %v1190
        %v1255 = vunpack.c.l.b16 %v1191
        %v1256 = vunpack.c.l.b16 %v1192
        %v1257 = vunpack.c.l.b16 %v1193
        %v1258 = vunpack.c.l.b16 %v1194
        %v1259 = vunpack.c.l.b16 %v1195
        %v1260 = vpack.c.b16 %v1229, %v1228
        %v1261 = vpack.c.b16 %v1231, %v1230
        %v1262 = vpack.c.b16 %v1233, %v1232
        %v1263 = vpack.c.b16 %v1235, %v1234
        %v1264 = vpack.c.b16 %v1237, %v1236
        %v1265 = vpack.c.b16 %v1239, %v1238
        %v1266 = vpack.c.b16 %v1241, %v1240
        %v1267 = vpack.c.b16 %v1243, %v1242
        %v1268 = vpack.c.b16 %v1245, %v1244
        %v1269 = vpack.c.b16 %v1247, %v1246
        %v1270 = vpack.c.b16 %v1249, %v1248
        %v1271 = vpack.c.b16 %v1251, %v1250
        %v1272 = vpack.c.b16 %v1253, %v1252
        %v1273 = vpack.c.b16 %v1255, %v1254
        %v1274 = vpack.c.b16 %v1257, %v1256
        %v1275 = vpack.c.b16 %v1259, %v1258
        %1292 = vmatprep.subr.bf16.mxu0 0
        %1293 = vmatpush1.bf16.msra.mxu0 %v1260
        %1294 = vmatprep.subr.bf16.mxu0 0
        %1295 = vmatpush1.bf16.msra.mxu0 %v1261
        %1296 = vmatprep.subr.bf16.mxu0 0
        %1297 = vmatpush1.bf16.msra.mxu0 %v1262
        %1298 = vmatprep.subr.bf16.mxu0 0
        %1299 = vmatpush1.bf16.msra.mxu0 %v1263
        %1300 = vmatprep.subr.bf16.mxu0 0
        %1301 = vmatpush1.bf16.msra.mxu0 %v1264
        %1302 = vmatprep.subr.bf16.mxu0 0
        %1303 = vmatpush1.bf16.msra.mxu0 %v1265
        %1304 = vmatprep.subr.bf16.mxu0 0
        %1305 = vmatpush1.bf16.msra.mxu0 %v1266
        %1306 = vmatprep.subr.bf16.mxu0 0
        %1307 = vmatpush1.bf16.msra.mxu0 %v1267
        %1308 = vmatprep.subr.bf16.mxu0 0
        %1309 = vmatpush1.bf16.msra.mxu0 %v1268
        %1310 = vmatprep.subr.bf16.mxu0 0
        %1311 = vmatpush1.bf16.msra.mxu0 %v1269
        %1312 = vmatprep.subr.bf16.mxu0 0
        %1313 = vmatpush1.bf16.msra.mxu0 %v1270
        %1314 = vmatprep.subr.bf16.mxu0 0
        %1315 = vmatpush1.bf16.msra.mxu0 %v1271
        %1316 = vmatprep.subr.bf16.mxu0 0
        %1317 = vmatpush1.bf16.msra.mxu0 %v1272
        %1318 = vmatprep.subr.bf16.mxu0 0
        %1319 = vmatpush1.bf16.msra.mxu0 %v1273
        %1320 = vmatprep.subr.bf16.mxu0 0
        %1321 = vmatpush1.bf16.msra.mxu0 %v1274
        %1322 = vmatprep.subr.bf16.mxu0 0
        %1323 = vmatpush1.bf16.msra.mxu0 %v1275
        %1324 = vmatprep.mubr.bf16.mxu0 %v1161
        %1325 = vmatmul.mubr.bf16.gmra.mrb[0].mxu0 %v1160
        %v1326 = vpop.f32.mrb[0].mxu0
        %v1327 = vadd.f32 0.0, %v1326
        %v1328 = vpop.f32.mrb[0].mxu0
        %v1329 = vpop.f32.mrb[0].mxu0
        %v1330 = vadd.f32 0.0, %v1329
        %v1331 = vpop.f32.mrb[0].mxu0
        %1332 = vmatprep.mubr.bf16.mxu0 %v1163
        %1333 = vmatmul.mubr.bf16.gmra.mrb[0].mxu0 %v1162
        %v1334 = vpop.f32.mrb[0].mxu0
        %v1335 = vadd.f32 0.0, %v1334
        %v1336 = vpop.f32.mrb[0].mxu0
        %v1337 = vpop.f32.mrb[0].mxu0
        %v1338 = vadd.f32 0.0, %v1337
        %v1339 = vpop.f32.mrb[0].mxu0
        %1340 = vdwg.mxu0
        %v1341 = vsel %vm562, %v1327, -inf
        %1342 = vmax.xlane.f32.xlu0 %v1341
        %v1343 = vpop.xlane.xlu0 %1342
        %v1344 = vsel %vm562, %v1330, -inf
        %1345 = vmax.xlane.f32.xlu0 %v1344
        %v1346 = vpop.xlane.xlu0 %1345
        %v1347 = vsel %vm562, %v1335, -inf
        %1348 = vmax.xlane.f32.xlu0 %v1347
        %v1349 = vpop.xlane.xlu0 %1348
        %v1350 = vsel %vm562, %v1338, -inf
        %1351 = vmax.xlane.f32.xlu0 %v1350
        %v1352 = vpop.xlane.xlu0 %1351
        %v1353 = vsub.f32 %v1327, %v1343
        %v1354 = vsub.f32 %v1330, %v1346
        %v1355 = vsub.f32 %v1335, %v1349
        %v1356 = vsub.f32 %v1338, %v1352
        %v1357 = vmul.f32 %v1353, 1.442695
        %v1358 = vpow.pop %v1357
        %v1359 = vmul.f32 %v1354, 1.442695
        %v1360 = vpow.pop %v1359
        %v1361 = vmul.f32 %v1355, 1.442695
        %v1362 = vpow.pop %v1361
        %v1363 = vmul.f32 %v1356, 1.442695
        %v1364 = vpow.pop %v1363
        %v1365 = vpack.c.bf16 %v1360, %v1358
        %v1366 = vpack.c.bf16 %v1364, %v1362
        %v1367 = vld [vmem:[#allocation7] sm:$0xf]
        %v1368 = vld [vmem:[#allocation7 + $0x4] sm:$0xf]
        %v1369 = vld [vmem:[#allocation7 + $0x8] sm:$0xf]
        %v1370 = vld [vmem:[#allocation7 + $0xc] sm:$0xf]
        %v1375 = vunpack.c.l.b16 %v1367
        %v1376 = vunpack.c.l.b16 %v1368
        %v1377 = vunpack.c.l.b16 %v1369
        %v1378 = vunpack.c.l.b16 %v1370
        %v1379 = vpack.c.b16 %v1376, %v1375
        %v1380 = vpack.c.b16 %v1378, %v1377
        %v1384 = vsel %vm562, %v1365, 0
        %v1387 = vsel %vm562, %v1366, 0
        %1389 = vmatprep.subr.bf16.mxu0 0
        %1390 = vmatpush1.bf16.msra.mxu0 %v1379
        %1391 = vmatprep.subr.bf16.mxu0 0
        %1392 = vmatpush1.bf16.msra.mxu0 %v1380
        %1393 = vmatprep.subr.bf16.mxu0 0
        %1394 = vmatpush1.bf16.msra.mxu0 0
        %1395 = vmatprep.subr.bf16.mxu0 0
        %1396 = vmatpush1.bf16.msra.mxu0 0
        %1397 = vmatprep.subr.bf16.mxu0 0
        %1398 = vmatpush1.bf16.msra.mxu0 0
        %1399 = vmatprep.subr.bf16.mxu0 0
        %1400 = vmatpush1.bf16.msra.mxu0 0
        %1401 = vmatprep.subr.bf16.mxu0 0
        %1402 = vmatpush1.bf16.msra.mxu0 0
        %1403 = vmatprep.subr.bf16.mxu0 0
        %1404 = vmatpush1.bf16.msra.mxu0 0
        %1405 = vmatprep.subr.bf16.mxu0 0
        %1406 = vmatpush1.bf16.msra.mxu0 0
        %1407 = vmatprep.subr.bf16.mxu0 0
        %1408 = vmatpush1.bf16.msra.mxu0 0
        %1409 = vmatprep.subr.bf16.mxu0 0
        %1410 = vmatpush1.bf16.msra.mxu0 0
        %1411 = vmatprep.subr.bf16.mxu0 0
        %1412 = vmatpush1.bf16.msra.mxu0 0
        %1413 = vmatprep.subr.bf16.mxu0 0
        %1414 = vmatpush1.bf16.msra.mxu0 0
        %1415 = vmatprep.subr.bf16.mxu0 0
        %1416 = vmatpush1.bf16.msra.mxu0 0
        %1417 = vmatprep.subr.bf16.mxu0 0
        %1418 = vmatpush1.bf16.msra.mxu0 0
        %1419 = vmatprep.subr.bf16.mxu0 0
        %1420 = vmatpush1.bf16.msra.mxu0 0
        %1421 = vmatprep.mubr.bf16.mxu0 0
        %1422 = vmatmul.mubr.bf16.gmra.mrb[0].mxu0 %v1384
        %v1423 = vpop.f32.mrb[0].mxu0
        %v1424 = vadd.f32 0.0, %v1423
        %v1425 = vpop.f32.mrb[0].mxu0
        %v1426 = vpop.f32.mrb[0].mxu0
        %v1427 = vadd.f32 0.0, %v1426
        %v1428 = vpop.f32.mrb[0].mxu0
        %1429 = vmatprep.mubr.bf16.mxu0 0
        %1430 = vmatmul.mubr.bf16.gmra.mrb[0].mxu0 %v1387
        %v1431 = vpop.f32.mrb[0].mxu0
        %v1432 = vadd.f32 0.0, %v1431
        %v1433 = vpop.f32.mrb[0].mxu0
        %v1434 = vpop.f32.mrb[0].mxu0
        %v1435 = vadd.f32 0.0, %v1434
        %v1436 = vpop.f32.mrb[0].mxu0
        %1437 = vdwg.mxu0
        %v1438 = vrcp.pop %v1424
        %v1439 = vrcp.pop %v1427
        %v1440 = vrcp.pop %v1432
        %v1441 = vrcp.pop %v1435
        %v1442 = vmul.f32 %v1358, %v1438
        %v1443 = vmul.f32 %v1360, %v1439
        %v1444 = vmul.f32 %v1362, %v1440
        %v1445 = vmul.f32 %v1364, %v1441
        %v1446 = vpack.c.bf16 %v1443, %v1442
        %v1447 = vpack.c.bf16 %v1445, %v1444
        %v1448 = vld [vmem:[#allocation9] sm:$0xff]
        %v1449 = vld [vmem:[#allocation9 + $0x8] sm:$0xff]
        %v1450 = vld [vmem:[#allocation9 + $0x10] sm:$0xff]
        %v1451 = vld [vmem:[#allocation9 + $0x18] sm:$0xff]
        %v1456 = vunpack.c.l.b16 %v1448
        %v1457 = vunpack.c.h.b16 %v1448
        %v1458 = vunpack.c.l.b16 %v1449
        %v1459 = vunpack.c.h.b16 %v1449
        %v1460 = vunpack.c.l.b16 %v1450
        %v1461 = vunpack.c.h.b16 %v1450
        %v1462 = vunpack.c.l.b16 %v1451
        %v1463 = vunpack.c.h.b16 %v1451
        %v1464 = vpack.c.b16 %v1458, %v1456
        %v1465 = vpack.c.b16 %v1459, %v1457
        %v1466 = vpack.c.b16 %v1462, %v1460
        %v1467 = vpack.c.b16 %v1463, %v1461
        %v1473 = vsel %vm562, %v1446, 0
        %v1476 = vsel %vm562, %v1447, 0
        %1478 = vmatprep.subr.bf16.mxu0 %v1465
        %1479 = vmatpush1.bf16.msra.mxu0 %v1464
        %1480 = vmatprep.subr.bf16.mxu0 %v1467
        %1481 = vmatpush1.bf16.msra.mxu0 %v1466
        %1482 = vmatprep.subr.bf16.mxu0 0
        %1483 = vmatpush1.bf16.msra.mxu0 0
        %1484 = vmatprep.subr.bf16.mxu0 0
        %1485 = vmatpush1.bf16.msra.mxu0 0
        %1486 = vmatprep.subr.bf16.mxu0 0
        %1487 = vmatpush1.bf16.msra.mxu0 0
        %1488 = vmatprep.subr.bf16.mxu0 0
        %1489 = vmatpush1.bf16.msra.mxu0 0
        %1490 = vmatprep.subr.bf16.mxu0 0
        %1491 = vmatpush1.bf16.msra.mxu0 0
        %1492 = vmatprep.subr.bf16.mxu0 0
        %1493 = vmatpush1.bf16.msra.mxu0 0
        %1494 = vmatprep.subr.bf16.mxu0 0
        %1495 = vmatpush1.bf16.msra.mxu0 0
        %1496 = vmatprep.subr.bf16.mxu0 0
        %1497 = vmatpush1.bf16.msra.mxu0 0
        %1498 = vmatprep.subr.bf16.mxu0 0
        %1499 = vmatpush1.bf16.msra.mxu0 0
        %1500 = vmatprep.subr.bf16.mxu0 0
        %1501 = vmatpush1.bf16.msra.mxu0 0
        %1502 = vmatprep.subr.bf16.mxu0 0
        %1503 = vmatpush1.bf16.msra.mxu0 0
        %1504 = vmatprep.subr.bf16.mxu0 0
        %1505 = vmatpush1.bf16.msra.mxu0 0
        %1506 = vmatprep.subr.bf16.mxu0 0
        %1507 = vmatpush1.bf16.msra.mxu0 0
        %1508 = vmatprep.subr.bf16.mxu0 0
        %1509 = vmatpush1.bf16.msra.mxu0 0
        %1510 = vmatprep.mubr.bf16.mxu0 0
        %1511 = vmatmul.mubr.bf16.gmra.mrb[0].mxu0 %v1473
        %v1512 = vpop.f32.mrb[0].mxu0
        %v1513 = vadd.f32 0.0, %v1512
        %v1514 = vpop.f32.mrb[0].mxu0
        %v1515 = vadd.f32 0.0, %v1514
        %v1516 = vpop.f32.mrb[0].mxu0
        %v1517 = vadd.f32 0.0, %v1516
        %v1518 = vpop.f32.mrb[0].mxu0
        %v1519 = vadd.f32 0.0, %v1518
        %1520 = vmatprep.mubr.bf16.mxu0 0
        %1521 = vmatmul.mubr.bf16.gmra.mrb[0].mxu0 %v1476
        %v1522 = vpop.f32.mrb[0].mxu0
        %v1523 = vadd.f32 0.0, %v1522
        %v1524 = vpop.f32.mrb[0].mxu0
        %v1525 = vadd.f32 0.0, %v1524
        %v1526 = vpop.f32.mrb[0].mxu0
        %v1527 = vadd.f32 0.0, %v1526
        %v1528 = vpop.f32.mrb[0].mxu0
        %v1529 = vadd.f32 0.0, %v1528
        %1530 = vdwg.mxu0
        %v1531 = vmul.f32 %v1513, %v1134
        %v1532 = vmul.f32 %v1515, %v1136
        %v1533 = vmul.f32 %v1517, %v1138
        %v1534 = vmul.f32 %v1519, %v1140
        %v1535 = vmul.f32 %v1523, %v1144
        %v1536 = vmul.f32 %v1525, %v1146
        %v1537 = vmul.f32 %v1527, %v1148
        %v1538 = vmul.f32 %v1529, %v1150
        %v1539 = vpack.c.bf16 %v1533, %v1531
        %v1540 = vpack.c.bf16 %v1534, %v1532
        %v1541 = vpack.c.bf16 %v1537, %v1535
        %v1542 = vpack.c.bf16 %v1538, %v1536
        %v1543 = vld [vmem:[%s9] sm:$0xf]
        %v1544 = vld [vmem:[%s9 + $0x4] sm:$0xf]
        %v1545 = vld [vmem:[%s9 + $0x8] sm:$0xf]
        %v1546 = vld [vmem:[%s9 + $0xc] sm:$0xf]
        %v1547 = vld [vmem:[%s9 + $0x10] sm:$0xf]
        %v1548 = vld [vmem:[%s9 + $0x14] sm:$0xf]
        %v1549 = vld [vmem:[%s9 + $0x18] sm:$0xf]
        %v1550 = vld [vmem:[%s9 + $0x1c] sm:$0xf]
        %v1551 = vld [vmem:[%s9 + $0x20] sm:$0xf]
        %v1552 = vld [vmem:[%s9 + $0x24] sm:$0xf]
        %v1553 = vld [vmem:[%s9 + $0x28] sm:$0xf]
        %v1554 = vld [vmem:[%s9 + $0x2c] sm:$0xf]
        %v1555 = vld [vmem:[%s9 + $0x30] sm:$0xf]
        %v1556 = vld [vmem:[%s9 + $0x34] sm:$0xf]
        %v1557 = vld [vmem:[%s9 + $0x38] sm:$0xf]
        %v1558 = vld [vmem:[%s9 + $0x3c] sm:$0xf]
        %v1559 = vld [vmem:[%s9 + $0x40] sm:$0xf]
        %v1560 = vld [vmem:[%s9 + $0x44] sm:$0xf]
        %v1561 = vld [vmem:[%s9 + $0x48] sm:$0xf]
        %v1562 = vld [vmem:[%s9 + $0x4c] sm:$0xf]
        %v1563 = vld [vmem:[%s9 + $0x50] sm:$0xf]
        %v1564 = vld [vmem:[%s9 + $0x54] sm:$0xf]
        %v1565 = vld [vmem:[%s9 + $0x58] sm:$0xf]
        %v1566 = vld [vmem:[%s9 + $0x5c] sm:$0xf]
        %v1567 = vld [vmem:[%s9 + $0x60] sm:$0xf]
        %v1568 = vld [vmem:[%s9 + $0x64] sm:$0xf]
        %v1569 = vld [vmem:[%s9 + $0x68] sm:$0xf]
        %v1570 = vld [vmem:[%s9 + $0x6c] sm:$0xf]
        %v1571 = vld [vmem:[%s9 + $0x70] sm:$0xf]
        %v1572 = vld [vmem:[%s9 + $0x74] sm:$0xf]
        %v1573 = vld [vmem:[%s9 + $0x78] sm:$0xf]
        %v1574 = vld [vmem:[%s9 + $0x7c] sm:$0xf]
        %v1575 = vld [vmem:[%s10] sm:$0x1]
        %v1577 = vlaneseq
        %v1578 = vshrl.u32 %v1577, 7
        %v1579 = vsub.s32 0, %v1578
        %v1580 = vrot.slane %v1575, %v1579
        %v1614 = vunpack.c.l.b16 %v1543
        %v1615 = vunpack.c.l.b16 %v1544
        %v1616 = vunpack.c.l.b16 %v1545
        %v1617 = vunpack.c.l.b16 %v1546
        %v1618 = vunpack.c.l.b16 %v1547
        %v1619 = vunpack.c.l.b16 %v1548
        %v1620 = vunpack.c.l.b16 %v1549
        %v1621 = vunpack.c.l.b16 %v1550
        %v1622 = vunpack.c.l.b16 %v1551
        %v1623 = vunpack.c.l.b16 %v1552
        %v1624 = vunpack.c.l.b16 %v1553
        %v1625 = vunpack.c.l.b16 %v1554
        %v1626 = vunpack.c.l.b16 %v1555
        %v1627 = vunpack.c.l.b16 %v1556
        %v1628 = vunpack.c.l.b16 %v1557
        %v1629 = vunpack.c.l.b16 %v1558
        %v1630 = vunpack.c.l.b16 %v1559
        %v1631 = vunpack.c.l.b16 %v1560
        %v1632 = vunpack.c.l.b16 %v1561
        %v1633 = vunpack.c.l.b16 %v1562
        %v1634 = vunpack.c.l.b16 %v1563
        %v1635 = vunpack.c.l.b16 %v1564
        %v1636 = vunpack.c.l.b16 %v1565
        %v1637 = vunpack.c.l.b16 %v1566
        %v1638 = vunpack.c.l.b16 %v1567
        %v1639 = vunpack.c.l.b16 %v1568
        %v1640 = vunpack.c.l.b16 %v1569
        %v1641 = vunpack.c.l.b16 %v1570
        %v1642 = vunpack.c.l.b16 %v1571
        %v1643 = vunpack.c.l.b16 %v1572
        %v1644 = vunpack.c.l.b16 %v1573
        %v1645 = vunpack.c.l.b16 %v1574
        %v1646 = vpack.c.b16 %v1615, %v1614
        %v1647 = vpack.c.b16 %v1617, %v1616
        %v1648 = vpack.c.b16 %v1619, %v1618
        %v1649 = vpack.c.b16 %v1621, %v1620
        %v1650 = vpack.c.b16 %v1623, %v1622
        %v1651 = vpack.c.b16 %v1625, %v1624
        %v1652 = vpack.c.b16 %v1627, %v1626
        %v1653 = vpack.c.b16 %v1629, %v1628
        %v1654 = vpack.c.b16 %v1631, %v1630
        %v1655 = vpack.c.b16 %v1633, %v1632
        %v1656 = vpack.c.b16 %v1635, %v1634
        %v1657 = vpack.c.b16 %v1637, %v1636
        %v1658 = vpack.c.b16 %v1639, %v1638
        %v1659 = vpack.c.b16 %v1641, %v1640
        %v1660 = vpack.c.b16 %v1643, %v1642
        %v1661 = vpack.c.b16 %v1645, %v1644
        %1678 = vmatprep.subr.bf16.mxu0 0
        %1679 = vmatpush1.bf16.msra.mxu0 %v1646
        %1680 = vmatprep.subr.bf16.mxu0 0
        %1681 = vmatpush1.bf16.msra.mxu0 %v1647
        %1682 = vmatprep.subr.bf16.mxu0 0
        %1683 = vmatpush1.bf16.msra.mxu0 %v1648
        %1684 = vmatprep.subr.bf16.mxu0 0
        %1685 = vmatpush1.bf16.msra.mxu0 %v1649
        %1686 = vmatprep.subr.bf16.mxu0 0
        %1687 = vmatpush1.bf16.msra.mxu0 %v1650
        %1688 = vmatprep.subr.bf16.mxu0 0
        %1689 = vmatpush1.bf16.msra.mxu0 %v1651
        %1690 = vmatprep.subr.bf16.mxu0 0
        %1691 = vmatpush1.bf16.msra.mxu0 %v1652
        %1692 = vmatprep.subr.bf16.mxu0 0
        %1693 = vmatpush1.bf16.msra.mxu0 %v1653
        %1694 = vmatprep.subr.bf16.mxu0 0
        %1695 = vmatpush1.bf16.msra.mxu0 %v1654
        %1696 = vmatprep.subr.bf16.mxu0 0
        %1697 = vmatpush1.bf16.msra.mxu0 %v1655
        %1698 = vmatprep.subr.bf16.mxu0 0
        %1699 = vmatpush1.bf16.msra.mxu0 %v1656
        %1700 = vmatprep.subr.bf16.mxu0 0
        %1701 = vmatpush1.bf16.msra.mxu0 %v1657
        %1702 = vmatprep.subr.bf16.mxu0 0
        %1703 = vmatpush1.bf16.msra.mxu0 %v1658
        %1704 = vmatprep.subr.bf16.mxu0 0
        %1705 = vmatpush1.bf16.msra.mxu0 %v1659
        %1706 = vmatprep.subr.bf16.mxu0 0
        %1707 = vmatpush1.bf16.msra.mxu0 %v1660
        %1708 = vmatprep.subr.bf16.mxu0 0
        %1709 = vmatpush1.bf16.msra.mxu0 %v1661
        %1710 = vmatprep.mubr.bf16.mxu0 %v1540
        %1711 = vmatmul.mubr.bf16.gmra.mrb[0].mxu0 %v1539
        %v1712 = vpop.f32.mrb[0].mxu0
        %v1713 = vadd.f32 %v1580, %v1712
        %v1714 = vpop.f32.mrb[0].mxu0
        %v1715 = vpop.f32.mrb[0].mxu0
        %v1716 = vadd.f32 %v1580, %v1715
        %v1717 = vpop.f32.mrb[0].mxu0
        %1718 = vmatprep.mubr.bf16.mxu0 %v1542
        %1719 = vmatmul.mubr.bf16.gmra.mrb[0].mxu0 %v1541
        %v1720 = vpop.f32.mrb[0].mxu0
        %v1721 = vadd.f32 %v1580, %v1720
        %v1722 = vpop.f32.mrb[0].mxu0
        %v1723 = vpop.f32.mrb[0].mxu0
        %v1724 = vadd.f32 %v1580, %v1723
        %v1725 = vpop.f32.mrb[0].mxu0
        %1726 = vdwg.mxu0
        %1727 = vst.msk [vmem:[%s513] sm:$0xff] %vm562, %v1713
        %1728 = vst.msk [vmem:[%s513 + $0x8] sm:$0xff] %vm562, %v1716
        %1729 = vst.msk [vmem:[%s513 + $0x10] sm:$0xff] %vm562, %v1721
        %1730 = vst.msk [vmem:[%s513 + $0x18] sm:$0xff] %vm562, %v1724
        %s1731 = smul.u32 4, %s27
        %p1732 = scmp.lt.s32.totalorder %s1731, 7
        %s1733 = scalar_select %p1732, %s1731, 7
        %s1734 = smul.addr %s1733, 8
        %s1735 = scalar_lea.vmem %s11, %s1734
        // Predicated region
        $region85: #{tpu_custom_call.1} parent=63 // pred_check
          %p1736 = pneg %p291
        $region86: #{tpu_custom_call.1} parent=63 // pred_check_branch
          %1738 = sbr.rel (%p1736) target = $region88
        $region87: #{tpu_custom_call.1} parent=63 // pred_region
          %s1739 = smul.u32 4, %s27
        $region88: #{tpu_custom_call.1} parent=63 // pred_fallthru
          _
      $region64: #{tpu_custom_call.1} parent=5 // pred_fallthru
        _
      %p1740 = scmp.le.s32.totalorder 2, %s22
      // Predicated region
      $region89: #{tpu_custom_call.1} parent=5 // pred_check
        %p1741 = pneg %p1740
      $region90: #{tpu_custom_call.1} parent=5 // pred_check_branch
        %1743 = sbr.rel (%p1741) target = $region92
      $region91: #{tpu_custom_call.1} parent=5 // pred_region
        %s1744 = ssub.s32 %s22, 2
        // Predicated region
        $region93: #{tpu_custom_call.1} parent=91 // pred_check
          %p1745 = pneg %p297
        $region94: #{tpu_custom_call.1} parent=91 // pred_check_branch
          %1747 = sbr.rel (%p1745) target = $region96
        $region95: #{tpu_custom_call.1} parent=91 // pred_region
          %s1748 = smul.u32 4, %s28
          %p1749 = scmp.lt.s32.totalorder %s1748, 7
          %s1750 = scalar_select %p1749, %s1748, 7
          %s1751 = smul.addr %s1750, 8
          %s1752 = scalar_lea.vmem %s11, %s1751
        $region96: #{tpu_custom_call.1} parent=91 // pred_fallthru
          _
      $region92: #{tpu_custom_call.1} parent=5 // pred_fallthru
        _
    $region6: #{tpu_custom_call.1} parent=1 // loop_footer
      %s26 = sadd.s32 1, %s22
    $region7: #{tpu_custom_call.1} parent=1 // loop_footer_branch
      %21 = sbr.rel target = $region3
    $region8: #{tpu_custom_call.1} parent=1 // loop_exit
      _
    %1753 = vsyncpa [#allocation3], 1
    %s1754 = scalar_lea.sflag [#allocation3], 1
    %1755 = vsyncpa %s1754, 1
    %1756 = vsyncpa [#allocation5], 1
    %1757 = vsyncpa [#allocation8], 1

</llo_original>
